<compile_context>
chip_gen: v7x
topology: tpu7x:2x2x1
jax: 0.10.0
libtpu: 0.0.40
codegen_flags: <defaults>
</compile_context>

<pallas_src>
import functools

import numpy as np
import jax
import jax.numpy as jnp
from jax.experimental import pallas as pl
from jax.experimental.pallas import tpu as pltpu

_HI = jax.lax.Precision.HIGHEST


def _round_up(v, m):
    return ((v + m - 1) // m) * m


# ----------------------------- Stage 1 kernel ---------------------------------
def _c4_stage1_kernel(x_ref, y_ref, w_a_ref, w_cond_ref, b_ref,
                      xnew_ref, ynew_ref, xsum_ref, cond_scr,
                      *, hw_real, need_mask):
    f32, bf16 = jnp.float32, jnp.bfloat16
    Cp = x_ref.shape[1]
    thw = x_ref.shape[2]
    C2 = 2 * Cp

    x = x_ref[0]                       # bf16 (Cp, thw)
    y = y_ref[0]
    b = b_ref[...]                     # (10*Cp, 1) f32 packed biases

    wa_x = w_a_ref[0]                  # (3Cp, Cp) = [x_tr ; x_tr_2 ; y_feat_fuse]
    wa_y = w_a_ref[1]                  # (3Cp, Cp) = [x_t_tr ; x_tr_2 ; x_feat_fuse]

    def mm(w, v):
        return jnp.dot(w, v, preferred_element_type=f32)

    # ---- fused input projections ----
    px = mm(wa_x[:C2], x) + b[:C2]              # [x_tr(x) ; x_tr_2(x)]
    py = mm(wa_y[:C2], y) + b[C2:2 * C2]        # [x_t_tr(y) ; x_tr_2(y)]

    # write relu'd halves into a shared (2Cp, thw) scratch -> ONE cond matmul
    cond_scr[:Cp] = jnp.maximum(px[:Cp], 0.0).astype(bf16)   # relu(x_tr(x))
    cond_scr[Cp:] = jnp.maximum(py[:Cp], 0.0).astype(bf16)   # relu(x_t_tr(y))
    x2 = px[Cp:]                                             # x_tr_2(x)
    y2 = py[Cp:]                                             # x_tr_2(y)

    # ---- single fused cond projection (alpha, beta, alpha_copy, beta_copy) ----
    proj = mm(w_cond_ref[...], cond_scr[...]) + b[4 * Cp:8 * Cp]   # (4Cp, thw)
    alpha, beta = proj[:Cp], proj[Cp:2 * Cp]
    alpha_c, beta_c = proj[2 * Cp:3 * Cp], proj[3 * Cp:]

    # ---- FiLM modulation + fuse 1x1 convs ----
    yf = jnp.maximum((alpha + 1.0) * y2 + beta, 0.0).astype(bf16)
    xf = jnp.maximum((alpha_c + 1.0) * x2 + beta_c, 0.0).astype(bf16)
    xnew = mm(wa_x[C2:], yf) + b[8 * Cp:9 * Cp]   # torch: x = y_feat_fuse(y_feat)
    ynew = mm(wa_y[C2:], xf) + b[9 * Cp:]         # torch: y = x_feat_fuse(x_feat)
    xnew_ref[0] = xnew.astype(bf16)
    ynew_ref[0] = ynew.astype(bf16)

    # ---- per-channel sums of xa = xnew + ynew for the global (GAP) branch ----
    xa = xnew + ynew
    if need_mask:   # mask spatial-padding lanes out of the global mean
        lane = jax.lax.broadcasted_iota(jnp.int32, (1, thw), 1)
        valid = (pl.program_id(1) * thw + lane) < hw_real
        xa = jnp.where(valid, xa, 0.0)
    part = jnp.sum(xa, axis=1, keepdims=True)     # (Cp, 1)

    @pl.when(pl.program_id(1) == 0)
    def _():
        xsum_ref[0] = jnp.zeros_like(part)

    xsum_ref[0] = xsum_ref[0] + part


# ----------------------------- Stage 2 kernel ---------------------------------
def _c4_stage2_kernel(xnew_ref, ynew_ref, xg_ref,
                      w_la1_ref, b_la1_ref, w_la2_ref, out_ref):
    f32, bf16 = jnp.float32, jnp.bfloat16
    xnew = xnew_ref[0]                 # bf16 (Cp, thw)
    ynew = ynew_ref[0]
    xa = xnew + ynew                   # bf16

    # local attention (BN folded in eval mode)
    t = jnp.dot(w_la1_ref[...], xa, preferred_element_type=f32) + b_la1_ref[...]
    a_loc = jnp.maximum(t, 0.0).astype(bf16)
    # xg_ref already contains  global-branch output + folded la_bn2/ga biases
    xlg = jnp.dot(w_la2_ref[...], a_loc, preferred_element_type=f32) + xg_ref[0]

    wei = jax.nn.sigmoid(xlg)
    xn = xnew.astype(f32)
    yn = ynew.astype(f32)
    # 2*x*wei + 2*y*(1-wei)  ==  2*(y + (x-y)*wei)
    out_ref[0] = (2.0 * (yn + (xn - yn) * wei)).astype(out_ref.dtype)


# ------------------------------- Wrapper --------------------------------------
def c4_forward(x_nchw, y_nchw, p, eps=1e-5):
    B, C, H, W = x_nchw.shape
    HW = H * W
    Ci = max(C // 4, 1)
    bf16, f32 = jnp.bfloat16, jnp.float32

    # zero-padded channels: keeps every matmul-result slice sublane aligned
    Cp = max(_round_up(C, 16), 16)
    Cip = max(_round_up(Ci, 16), 16)

    # spatial (lane) tiling: bounded working set, lets BlockSpec pipeline DMAs
    THW = min(512, _round_up(HW, 128))
    HWp = _round_up(HW, THW)
    n_hw = HWp // THW
    need_mask = HWp != HW

    x = jnp.pad(x_nchw.reshape(B, C, HW),
                ((0, 0), (0, Cp - C), (0, HWp - HW))).astype(bf16)
    y = jnp.pad(y_nchw.reshape(B, C, HW),
                ((0, 0), (0, Cp - C), (0, HWp - HW))).astype(bf16)

    def w2d(name):                      # (Cout, Cin, 1, 1) -> (Cout, Cin)
        return p[f'{name}_w'][:, :, 0, 0]

    def pad_w(w, rows, cols):
        return jnp.pad(w, ((0, rows - w.shape[0]), (0, cols - w.shape[1])))

    def pad_b(v, rows):
        return jnp.pad(v, (0, rows - v.shape[0]))

    # --- pass-1 packed weight slabs (3 arrays total) ---
    w_a = jnp.stack([
        jnp.concatenate([pad_w(w2d('x_tr'), Cp, Cp),
                         pad_w(w2d('x_tr_2'), Cp, Cp),
                         pad_w(w2d('y_feat_fuse'), Cp, Cp)], axis=0),
        jnp.concatenate([pad_w(w2d('x_t_tr'), Cp, Cp),
                         pad_w(w2d('x_tr_2'), Cp, Cp),
                         pad_w(w2d('x_feat_fuse'), Cp, Cp)], axis=0)],
        axis=0).astype(bf16)                                       # (2, 3Cp, Cp)

    def cond_pack(w):   # (C, 2C) -> (Cp, 2Cp): x-half cols then y-half cols
        return jnp.concatenate([pad_w(w[:, :C], Cp, Cp),
                                pad_w(w[:, C:], Cp, Cp)], axis=1)

    w_cond = jnp.concatenate(
        [cond_pack(w2d(n)) for n in
         ('tr_alpha', 'tr_beta', 'tr_alpha_copy', 'tr_beta_copy')],
        axis=0).astype(bf16)                                       # (4Cp, 2Cp)

    b_all = jnp.concatenate([
        pad_b(p['x_tr_b'], Cp), pad_b(p['x_tr_2_b'], Cp),
        pad_b(p['x_t_tr_b'], Cp), pad_b(p['x_tr_2_b'], Cp),
        pad_b(p['tr_alpha_b'], Cp), pad_b(p['tr_beta_b'], Cp),
        pad_b(p['tr_alpha_copy_b'], Cp), pad_b(p['tr_beta_copy_b'], Cp),
        pad_b(p['y_feat_fuse_b'], Cp), pad_b(p['x_feat_fuse_b'], Cp),
    ]).reshape(10 * Cp, 1).astype(f32)

    # --- attention weights: fold BN (eval mode) ---
    s1 = p['la_bn1_gamma'] / jnp.sqrt(p['la_bn1_var'] + eps)
    h1 = p['la_bn1_beta'] - p['la_bn1_mean'] * s1
    s2 = p['la_bn2_gamma'] / jnp.sqrt(p['la_bn2_var'] + eps)
    h2 = p['la_bn2_beta'] - p['la_bn2_mean'] * s2

    w_la1 = pad_w(s1[:, None] * w2d('la_conv1'), Cip, Cp).astype(bf16)   # (Cip, Cp)
    b_la1 = pad_b(s1 * p['la_conv1_b'] + h1, Cip).reshape(Cip, 1).astype(f32)
    w_la2 = pad_w(s2[:, None] * w2d('la_conv2'), Cp, Cip).astype(bf16)   # (Cp, Cip)
    b_la2 = s2 * p['la_conv2_b'] + h2                                    # (C,)

    data_spec = pl.BlockSpec((1, Cp, THW), lambda b, h: (b, 0, h))
    col_spec = pl.BlockSpec((1, Cp, 1), lambda b, h: (b, 0, 0))

    def const_spec(shape):
        n = len(shape)
        return pl.BlockSpec(shape, lambda b, h, _n=n: (0,) * _n)

    vmem_cap = 48 * 1024 * 1024   # above the 16/32 MiB scoped defaults, < v7x 64 MiB

    # ---------------- pass 1: projections, FiLM, fuse, channel sums -----------
    stage1 = functools.partial(_c4_stage1_kernel, hw_real=HW, need_mask=need_mask)
    xnew, ynew, xa_sum = pl.pallas_call(
        stage1,
        grid=(B, n_hw),
        in_specs=[data_spec, data_spec,
                  const_spec(w_a.shape), const_spec(w_cond.shape),
                  const_spec(b_all.shape)],
        out_specs=[data_spec, data_spec, col_spec],
        out_shape=[jax.ShapeDtypeStruct((B, Cp, HWp), bf16),
                   jax.ShapeDtypeStruct((B, Cp, HWp), bf16),
                   jax.ShapeDtypeStruct((B, Cp, 1), f32)],
        scratch_shapes=[pltpu.VMEM((2 * Cp, THW), bf16)],
        compiler_params=pltpu.CompilerParams(
            dimension_semantics=("parallel", "arbitrary"),
            vmem_limit_bytes=vmem_cap),
    )(x, y, w_a, w_cond, b_all)

    # -------- tiny global-attention branch on the (Cp, 1) mean (plain XLA) ----
    # GAP commutes with the 1x1 convs; doing this once per batch element removes
    # the redundant rank-1 broadcast matmul of the previous version.
    w_ga1 = pad_w(w2d('ga_conv1'), Cip, Cp)
    b_ga1 = pad_b(p['ga_conv1_b'], Cip).reshape(1, Cip, 1)
    w_ga2 = pad_w(w2d('ga_conv2'), Cp, Cip)
    b_out = pad_b(b_la2 + p['ga_conv2_b'], Cp).reshape(1, Cp, 1)

    mean = xa_sum * (1.0 / HW)                                       # (B, Cp, 1)
    g1 = jnp.maximum(
        jnp.einsum('oi,bif->bof', w_ga1, mean, precision=_HI) + b_ga1, 0.0)
    xg = (jnp.einsum('oi,bif->bof', w_ga2, g1, precision=_HI) + b_out).astype(f32)

    # ---------------- pass 2: local attention gate + combine ------------------
    out = pl.pallas_call(
        _c4_stage2_kernel,
        grid=(B, n_hw),
        in_specs=[data_spec, data_spec, col_spec,
                  const_spec(w_la1.shape), const_spec(b_la1.shape),
                  const_spec(w_la2.shape)],
        out_specs=data_spec,
        out_shape=jax.ShapeDtypeStruct((B, Cp, HWp), f32),
        compiler_params=pltpu.CompilerParams(
            dimension_semantics=("parallel", "parallel"),
            vmem_limit_bytes=vmem_cap),
    )(xnew, ynew, xg, w_la1, b_la1, w_la2)

    return out[:, :C, :HW].reshape(B, C, H, W)


# ----------------------------- Parameter init ---------------------------------
def init_params(key, c1):
    ci = max(c1 // 4, 1)
    keys = jax.random.split(key, 64)
    it = iter(keys)

    def conv_w(cout, cin):
        return 0.1 * jax.random.normal(next(it), (cout, cin, 1, 1), jnp.float32)

    def b(c):
        return 0.1 * jax.random.normal(next(it), (c,), jnp.float32)

    p = {}
    for name, cin in [('x_tr', c1), ('x_t_tr', c1), ('x_tr_2', c1), ('x_t_tr_2', c1),
                      ('x_feat_fuse', c1), ('y_feat_fuse', c1),
                      ('tr_alpha', 2 * c1), ('tr_beta', 2 * c1),
                      ('tr_alpha_copy', 2 * c1), ('tr_beta_copy', 2 * c1)]:
        p[f'{name}_w'] = conv_w(c1, cin)
        p[f'{name}_b'] = b(c1)

    # local_att: Conv(c1->ci) BN ReLU Conv(ci->c1) BN
    p['la_conv1_w'] = conv_w(ci, c1); p['la_conv1_b'] = b(ci)
    for s, c in [('la_bn1', ci), ('la_bn2', c1)]:
        p[f'{s}_gamma'] = 1.0 + 0.1 * jax.random.normal(next(it), (c,), jnp.float32)
        p[f'{s}_beta'] = 0.1 * jax.random.normal(next(it), (c,), jnp.float32)
        p[f'{s}_mean'] = 0.1 * jax.random.normal(next(it), (c,), jnp.float32)
        p[f'{s}_var'] = jnp.abs(1.0 + 0.1 * jax.random.normal(next(it), (c,), jnp.float32))
    p['la_conv2_w'] = conv_w(c1, ci); p['la_conv2_b'] = b(c1)

    # global_att: GAP Conv(c1->ci) ReLU Conv(ci->c1)
    p['ga_conv1_w'] = conv_w(ci, c1); p['ga_conv1_b'] = b(ci)
    p['ga_conv2_w'] = conv_w(c1, ci); p['ga_conv2_b'] = b(c1)
    return p


# ----------------------------- Pure-JAX reference ------------------------------
def reference(x, y, p, eps=1e-5):
    def conv1x1(z, w, b):
        out = jax.lax.conv_general_dilated(
            z, w, (1, 1), 'VALID',
            dimension_numbers=('NCHW', 'OIHW', 'NCHW'), precision=_HI)
        return out + b.reshape(1, -1, 1, 1)

    relu = lambda v: jnp.maximum(v, 0.0)

    def bn(z, pre):
        s = p[f'{pre}_gamma'] / jnp.sqrt(p[f'{pre}_var'] + eps)
        h = p[f'{pre}_beta'] - p[f'{pre}_mean'] * s
        return z * s.reshape(1, -1, 1, 1) + h.reshape(1, -1, 1, 1)

    x_tr = relu(conv1x1(x, p['x_tr_w'], p['x_tr_b']))
    y_tr = relu(conv1x1(y, p['x_t_tr_w'], p['x_t_tr_b']))
    cond = jnp.concatenate([x_tr, y_tr], axis=1)
    alpha = conv1x1(cond, p['tr_alpha_w'], p['tr_alpha_b'])
    beta = conv1x1(cond, p['tr_beta_w'], p['tr_beta_b'])
    alpha_c = conv1x1(cond, p['tr_alpha_copy_w'], p['tr_alpha_copy_b'])
    beta_c = conv1x1(cond, p['tr_beta_copy_w'], p['tr_beta_copy_b'])

    y_feat = conv1x1(y, p['x_tr_2_w'], p['x_tr_2_b'])
    y_feat = relu((alpha + 1.0) * y_feat + beta)
    y_feat_fuse = conv1x1(y_feat, p['y_feat_fuse_w'], p['y_feat_fuse_b'])

    x_feat = conv1x1(x, p['x_tr_2_w'], p['x_tr_2_b'])
    x_feat = relu((alpha_c + 1.0) * x_feat + beta_c)
    x_feat_fuse = conv1x1(x_feat, p['x_feat_fuse_w'], p['x_feat_fuse_b'])

    xn, yn = y_feat_fuse, x_feat_fuse
    xa = xn + yn

    xl = conv1x1(xa, p['la_conv1_w'], p['la_conv1_b'])
    xl = relu(bn(xl, 'la_bn1'))
    xl = bn(conv1x1(xl, p['la_conv2_w'], p['la_conv2_b']), 'la_bn2')

    g = jnp.mean(xa, axis=(2, 3), keepdims=True)
    xg = relu(conv1x1(g, p['ga_conv1_w'], p['ga_conv1_b']))
    xg = conv1x1(xg, p['ga_conv2_w'], p['ga_conv2_b'])

    wei = jax.nn.sigmoid(xl + xg)
    return 2.0 * xn * wei + 2.0 * yn * (1.0 - wei)


if __name__ == "__main__":
    key = jax.random.PRNGKey(0)
    kx, ky, kp = jax.random.split(key, 3)
    B, C, H, W = 2, 4, 16, 16
    x = jax.random.normal(kx, (B, C, H, W), jnp.float32)
    y = jax.random.normal(ky, (B, C, H, W), jnp.float32)
    params = init_params(kp, C)

    fwd = jax.jit(c4_forward)
    out = fwd(x, y, params)
    jax.block_until_ready(out)

    assert out.shape == (B, C, H, W)

    ref = reference(x, y, params)
    # bf16 inputs/weights with f32 MXU accumulation -> loose tolerance
    np.testing.assert_allclose(np.asarray(out), np.asarray(ref), rtol=3e-2, atol=3e-2)

    print("KERNEL_OK")
</pallas_src>

<mosaic_0001>
module attributes {stable_mosaic.version = 11 : i64} {
  func.func @_c4_stage1_kernel(%arg0: i32, %arg1: i32, %arg2: memref<1x16x256xbf16, #tpu.memory_space<vmem>>, %arg3: memref<1x16x256xbf16, #tpu.memory_space<vmem>>, %arg4: memref<2x48x16xbf16, #tpu.memory_space<vmem>>, %arg5: memref<64x32xbf16, #tpu.memory_space<vmem>>, %arg6: memref<160x1xf32, #tpu.memory_space<vmem>>, %arg7: memref<1x16x256xbf16, #tpu.memory_space<vmem>>, %arg8: memref<1x16x256xbf16, #tpu.memory_space<vmem>>, %arg9: memref<1x16x1xf32, #tpu.memory_space<vmem>>, %arg10: memref<32x256xbf16, #tpu.memory_space<vmem>>) attributes {dimension_semantics = [#tpu.dimension_semantics<parallel>, #tpu.dimension_semantics<arbitrary>], iteration_bounds = array<i64: 2, 1>, scalar_prefetch = 0 : i64, scratch_operands = 1 : i64, tpu.core_type = #tpu.core_type<tc>, window_params = [{transform_indices = @transform_0, window_bounds = array<i64: 1, 16, 256>}, {transform_indices = @transform_1, window_bounds = array<i64: 1, 16, 256>}, {pipeline_mode = #tpu.pipeline_mode<synchronous>, transform_indices = @transform_2, window_bounds = array<i64: 2, 48, 16>}, {pipeline_mode = #tpu.pipeline_mode<synchronous>, transform_indices = @transform_3, window_bounds = array<i64: 64, 32>}, {pipeline_mode = #tpu.pipeline_mode<synchronous>, transform_indices = @transform_4, window_bounds = array<i64: 160, 1>}, {transform_indices = @transform_5, window_bounds = array<i64: 1, 16, 256>}, {transform_indices = @transform_6, window_bounds = array<i64: 1, 16, 256>}, {transform_indices = @transform_7, window_bounds = array<i64: 1, 16, 1>}]} {
    %c0 = arith.constant 0 : index
    %c0_0 = arith.constant 0 : index
    %c0_1 = arith.constant 0 : index
    %0 = vector.load %arg2[%c0, %c0_0, %c0_1] : memref<1x16x256xbf16, #tpu.memory_space<vmem>>, vector<1x16x256xbf16>
    %1 = vector.shape_cast %0 : vector<1x16x256xbf16> to vector<16x256xbf16>
    %c0_2 = arith.constant 0 : index
    %c0_3 = arith.constant 0 : index
    %c0_4 = arith.constant 0 : index
    %2 = vector.load %arg3[%c0_2, %c0_3, %c0_4] : memref<1x16x256xbf16, #tpu.memory_space<vmem>>, vector<1x16x256xbf16>
    %3 = vector.shape_cast %2 : vector<1x16x256xbf16> to vector<16x256xbf16>
    %c0_5 = arith.constant 0 : index
    %c0_6 = arith.constant 0 : index
    %4 = vector.load %arg6[%c0_5, %c0_6] : memref<160x1xf32, #tpu.memory_space<vmem>>, vector<160x1xf32>
    %c0_7 = arith.constant 0 : index
    %c0_8 = arith.constant 0 : index
    %c0_9 = arith.constant 0 : index
    %5 = vector.load %arg4[%c0_7, %c0_8, %c0_9] : memref<2x48x16xbf16, #tpu.memory_space<vmem>>, vector<1x48x16xbf16>
    %6 = vector.shape_cast %5 : vector<1x48x16xbf16> to vector<48x16xbf16>
    %c1 = arith.constant 1 : index
    %c0_10 = arith.constant 0 : index
    %c0_11 = arith.constant 0 : index
    %7 = vector.load %arg4[%c1, %c0_10, %c0_11] : memref<2x48x16xbf16, #tpu.memory_space<vmem>>, vector<1x48x16xbf16>
    %8 = vector.shape_cast %7 : vector<1x48x16xbf16> to vector<48x16xbf16>
    %9 = vector.extract_strided_slice %6 {offsets = [0, 0], sizes = [32, 16], strides = [1, 1]} : vector<48x16xbf16> to vector<32x16xbf16>
    %cst = arith.constant dense<0.000000e+00> : vector<32x256xf32>
    %10 = tpu.matmul %9, %1, %cst {dimension_numbers = #tpu.dot_dimension_numbers<[1], [0], [0], [1], [0, 0, 1, 1], [], []>} : vector<32x16xbf16>, vector<16x256xbf16>, vector<32x256xf32> -> vector<32x256xf32>
    %11 = vector.extract_strided_slice %4 {offsets = [0, 0], sizes = [32, 1], strides = [1, 1]} : vector<160x1xf32> to vector<32x1xf32>
    %12 = vector.broadcast %11 : vector<32x1xf32> to vector<32x256xf32>
    %13 = arith.addf %10, %12 : vector<32x256xf32>
    %14 = vector.extract_strided_slice %8 {offsets = [0, 0], sizes = [32, 16], strides = [1, 1]} : vector<48x16xbf16> to vector<32x16xbf16>
    %cst_12 = arith.constant dense<0.000000e+00> : vector<32x256xf32>
    %15 = tpu.matmul %14, %3, %cst_12 {dimension_numbers = #tpu.dot_dimension_numbers<[1], [0], [0], [1], [0, 0, 1, 1], [], []>} : vector<32x16xbf16>, vector<16x256xbf16>, vector<32x256xf32> -> vector<32x256xf32>
    %16 = vector.extract_strided_slice %4 {offsets = [32, 0], sizes = [32, 1], strides = [1, 1]} : vector<160x1xf32> to vector<32x1xf32>
    %17 = vector.broadcast %16 : vector<32x1xf32> to vector<32x256xf32>
    %18 = arith.addf %15, %17 : vector<32x256xf32>
    %19 = vector.extract_strided_slice %13 {offsets = [0, 0], sizes = [16, 256], strides = [1, 1]} : vector<32x256xf32> to vector<16x256xf32>
    %cst_13 = arith.constant 0.000000e+00 : f32
    %20 = vector.broadcast %cst_13 : f32 to vector<16x256xf32>
    %21 = arith.maximumf %19, %20 : vector<16x256xf32>
    %22 = arith.truncf %21 : vector<16x256xf32> to vector<16x256xbf16>
    %c0_14 = arith.constant 0 : index
    %c0_15 = arith.constant 0 : index
    %23 = vector.load %arg10[%c0_14, %c0_15] : memref<32x256xbf16, #tpu.memory_space<vmem>>, vector<16x256xbf16>
    tpu.vector_store %arg10[%c0_14, %c0_15], %22 {strides = array<i32>} : memref<32x256xbf16, #tpu.memory_space<vmem>>, vector<16x256xbf16>,
    %24 = vector.extract_strided_slice %18 {offsets = [0, 0], sizes = [16, 256], strides = [1, 1]} : vector<32x256xf32> to vector<16x256xf32>
    %cst_16 = arith.constant 0.000000e+00 : f32
    %25 = vector.broadcast %cst_16 : f32 to vector<16x256xf32>
    %26 = arith.maximumf %24, %25 : vector<16x256xf32>
    %27 = arith.truncf %26 : vector<16x256xf32> to vector<16x256xbf16>
    %c16 = arith.constant 16 : index
    %c0_17 = arith.constant 0 : index
    %28 = vector.load %arg10[%c16, %c0_17] : memref<32x256xbf16, #tpu.memory_space<vmem>>, vector<16x256xbf16>
    tpu.vector_store %arg10[%c16, %c0_17], %27 {strides = array<i32>} : memref<32x256xbf16, #tpu.memory_space<vmem>>, vector<16x256xbf16>,
    %29 = vector.extract_strided_slice %13 {offsets = [16, 0], sizes = [16, 256], strides = [1, 1]} : vector<32x256xf32> to vector<16x256xf32>
    %30 = vector.extract_strided_slice %18 {offsets = [16, 0], sizes = [16, 256], strides = [1, 1]} : vector<32x256xf32> to vector<16x256xf32>
    %c0_18 = arith.constant 0 : index
    %c0_19 = arith.constant 0 : index
    %31 = vector.load %arg5[%c0_18, %c0_19] : memref<64x32xbf16, #tpu.memory_space<vmem>>, vector<64x32xbf16>
    %c0_20 = arith.constant 0 : index
    %c0_21 = arith.constant 0 : index
    %32 = vector.load %arg10[%c0_20, %c0_21] : memref<32x256xbf16, #tpu.memory_space<vmem>>, vector<32x256xbf16>
    %cst_22 = arith.constant dense<0.000000e+00> : vector<64x256xf32>
    %33 = tpu.matmul %31, %32, %cst_22 {dimension_numbers = #tpu.dot_dimension_numbers<[1], [0], [0], [1], [0, 0, 1, 1], [], []>} : vector<64x32xbf16>, vector<32x256xbf16>, vector<64x256xf32> -> vector<64x256xf32>
    %34 = vector.extract_strided_slice %4 {offsets = [64, 0], sizes = [64, 1], strides = [1, 1]} : vector<160x1xf32> to vector<64x1xf32>
    %35 = vector.broadcast %34 : vector<64x1xf32> to vector<64x256xf32>
    %36 = arith.addf %33, %35 : vector<64x256xf32>
    %37 = vector.extract_strided_slice %36 {offsets = [0, 0], sizes = [16, 256], strides = [1, 1]} : vector<64x256xf32> to vector<16x256xf32>
    %38 = vector.extract_strided_slice %36 {offsets = [16, 0], sizes = [16, 256], strides = [1, 1]} : vector<64x256xf32> to vector<16x256xf32>
    %39 = vector.extract_strided_slice %36 {offsets = [32, 0], sizes = [16, 256], strides = [1, 1]} : vector<64x256xf32> to vector<16x256xf32>
    %40 = vector.extract_strided_slice %36 {offsets = [48, 0], sizes = [16, 256], strides = [1, 1]} : vector<64x256xf32> to vector<16x256xf32>
    %cst_23 = arith.constant 1.000000e+00 : f32
    %41 = vector.broadcast %cst_23 : f32 to vector<16x256xf32>
    %42 = arith.addf %37, %41 : vector<16x256xf32>
    %43 = arith.mulf %42, %30 : vector<16x256xf32>
    %44 = arith.addf %43, %38 : vector<16x256xf32>
    %cst_24 = arith.constant 0.000000e+00 : f32
    %45 = vector.broadcast %cst_24 : f32 to vector<16x256xf32>
    %46 = arith.maximumf %44, %45 : vector<16x256xf32>
    %47 = arith.truncf %46 : vector<16x256xf32> to vector<16x256xbf16>
    %cst_25 = arith.constant 1.000000e+00 : f32
    %48 = vector.broadcast %cst_25 : f32 to vector<16x256xf32>
    %49 = arith.addf %39, %48 : vector<16x256xf32>
    %50 = arith.mulf %49, %29 : vector<16x256xf32>
    %51 = arith.addf %50, %40 : vector<16x256xf32>
    %cst_26 = arith.constant 0.000000e+00 : f32
    %52 = vector.broadcast %cst_26 : f32 to vector<16x256xf32>
    %53 = arith.maximumf %51, %52 : vector<16x256xf32>
    %54 = arith.truncf %53 : vector<16x256xf32> to vector<16x256xbf16>
    %55 = vector.extract_strided_slice %6 {offsets = [32, 0], sizes = [16, 16], strides = [1, 1]} : vector<48x16xbf16> to vector<16x16xbf16>
    %cst_27 = arith.constant dense<0.000000e+00> : vector<16x256xf32>
    %56 = tpu.matmul %55, %47, %cst_27 {dimension_numbers = #tpu.dot_dimension_numbers<[1], [0], [0], [1], [0, 0, 1, 1], [], []>} : vector<16x16xbf16>, vector<16x256xbf16>, vector<16x256xf32> -> vector<16x256xf32>
    %57 = vector.extract_strided_slice %4 {offsets = [128, 0], sizes = [16, 1], strides = [1, 1]} : vector<160x1xf32> to vector<16x1xf32>
    %58 = vector.broadcast %57 : vector<16x1xf32> to vector<16x256xf32>
    %59 = arith.addf %56, %58 : vector<16x256xf32>
    %60 = vector.extract_strided_slice %8 {offsets = [32, 0], sizes = [16, 16], strides = [1, 1]} : vector<48x16xbf16> to vector<16x16xbf16>
    %cst_28 = arith.constant dense<0.000000e+00> : vector<16x256xf32>
    %61 = tpu.matmul %60, %54, %cst_28 {dimension_numbers = #tpu.dot_dimension_numbers<[1], [0], [0], [1], [0, 0, 1, 1], [], []>} : vector<16x16xbf16>, vector<16x256xbf16>, vector<16x256xf32> -> vector<16x256xf32>
    %62 = vector.extract_strided_slice %4 {offsets = [144, 0], sizes = [16, 1], strides = [1, 1]} : vector<160x1xf32> to vector<16x1xf32>
    %63 = vector.broadcast %62 : vector<16x1xf32> to vector<16x256xf32>
    %64 = arith.addf %61, %63 : vector<16x256xf32>
    %65 = arith.truncf %59 : vector<16x256xf32> to vector<16x256xbf16>
    %c0_29 = arith.constant 0 : index
    %c0_30 = arith.constant 0 : index
    %c0_31 = arith.constant 0 : index
    %66 = vector.load %arg7[%c0_29, %c0_30, %c0_31] : memref<1x16x256xbf16, #tpu.memory_space<vmem>>, vector<1x16x256xbf16>
    %67 = vector.shape_cast %66 : vector<1x16x256xbf16> to vector<16x256xbf16>
    %68 = vector.shape_cast %65 : vector<16x256xbf16> to vector<1x16x256xbf16>
    tpu.vector_store %arg7[%c0_29, %c0_30, %c0_31], %68 {strides = array<i32>} : memref<1x16x256xbf16, #tpu.memory_space<vmem>>, vector<1x16x256xbf16>,
    %69 = arith.truncf %64 : vector<16x256xf32> to vector<16x256xbf16>
    %c0_32 = arith.constant 0 : index
    %c0_33 = arith.constant 0 : index
    %c0_34 = arith.constant 0 : index
    %70 = vector.load %arg8[%c0_32, %c0_33, %c0_34] : memref<1x16x256xbf16, #tpu.memory_space<vmem>>, vector<1x16x256xbf16>
    %71 = vector.shape_cast %70 : vector<1x16x256xbf16> to vector<16x256xbf16>
    %72 = vector.shape_cast %69 : vector<16x256xbf16> to vector<1x16x256xbf16>
    tpu.vector_store %arg8[%c0_32, %c0_33, %c0_34], %72 {strides = array<i32>} : memref<1x16x256xbf16, #tpu.memory_space<vmem>>, vector<1x16x256xbf16>,
    %73 = arith.addf %59, %64 : vector<16x256xf32>
    %cst_35 = arith.constant dense<0.000000e+00> : vector<16xf32>
    %74 = vector.multi_reduction <add>, %73, %cst_35 [1] : vector<16x256xf32> to vector<16xf32>
    %75 = vector.shape_cast %74 : vector<16xf32> to vector<16x1xf32>
    %c0_i32 = arith.constant 0 : i32
    %76 = arith.cmpi eq, %arg1, %c0_i32 : i32
    %77 = arith.extui %76 : i1 to i32
    %c0_i32_36 = arith.constant 0 : i32
    %78 = arith.cmpi ne, %77, %c0_i32_36 : i32
    scf.if %78 {
      %cst_43 = arith.constant 0.000000e+00 : f32
      %85 = vector.broadcast %cst_43 : f32 to vector<16x1xf32>
      %c0_44 = arith.constant 0 : index
      %c0_45 = arith.constant 0 : index
      %c0_46 = arith.constant 0 : index
      %86 = vector.load %arg9[%c0_44, %c0_45, %c0_46] : memref<1x16x1xf32, #tpu.memory_space<vmem>>, vector<1x16x1xf32>
      %87 = vector.shape_cast %86 : vector<1x16x1xf32> to vector<16x1xf32>
      %88 = vector.shape_cast %85 : vector<16x1xf32> to vector<1x16x1xf32>
      tpu.vector_store %arg9[%c0_44, %c0_45, %c0_46], %88 {strides = array<i32>} : memref<1x16x1xf32, #tpu.memory_space<vmem>>, vector<1x16x1xf32>,
    } else {
    }
    %c0_37 = arith.constant 0 : index
    %c0_38 = arith.constant 0 : index
    %c0_39 = arith.constant 0 : index
    %79 = vector.load %arg9[%c0_37, %c0_38, %c0_39] : memref<1x16x1xf32, #tpu.memory_space<vmem>>, vector<1x16x1xf32>
    %80 = vector.shape_cast %79 : vector<1x16x1xf32> to vector<16x1xf32>
    %81 = arith.addf %80, %75 : vector<16x1xf32>
    %c0_40 = arith.constant 0 : index
    %c0_41 = arith.constant 0 : index
    %c0_42 = arith.constant 0 : index
    %82 = vector.load %arg9[%c0_40, %c0_41, %c0_42] : memref<1x16x1xf32, #tpu.memory_space<vmem>>, vector<1x16x1xf32>
    %83 = vector.shape_cast %82 : vector<1x16x1xf32> to vector<16x1xf32>
    %84 = vector.shape_cast %81 : vector<16x1xf32> to vector<1x16x1xf32>
    tpu.vector_store %arg9[%c0_40, %c0_41, %c0_42], %84 {strides = array<i32>} : memref<1x16x1xf32, #tpu.memory_space<vmem>>, vector<1x16x1xf32>,
    return
  }
  func.func @transform_0(%arg0: i32, %arg1: i32) -> (i32, i32, i32) {
    %c0_i32 = arith.constant 0 : i32
    %c0_i32_0 = arith.constant 0 : i32
    return %arg0, %c0_i32, %arg1 : i32, i32, i32
  }
  func.func @transform_1(%arg0: i32, %arg1: i32) -> (i32, i32, i32) {
    %c0_i32 = arith.constant 0 : i32
    %c0_i32_0 = arith.constant 0 : i32
    return %arg0, %c0_i32, %arg1 : i32, i32, i32
  }
  func.func @transform_2(%arg0: i32, %arg1: i32) -> (i32, i32, i32) {
    %c0_i32 = arith.constant 0 : i32
    %c0_i32_0 = arith.constant 0 : i32
    %c0_i32_1 = arith.constant 0 : i32
    %c0_i32_2 = arith.constant 0 : i32
    return %c0_i32, %c0_i32_0, %c0_i32_1 : i32, i32, i32
  }
  func.func @transform_3(%arg0: i32, %arg1: i32) -> (i32, i32) {
    %c0_i32 = arith.constant 0 : i32
    %c0_i32_0 = arith.constant 0 : i32
    %c0_i32_1 = arith.constant 0 : i32
    return %c0_i32, %c0_i32_0 : i32, i32
  }
  func.func @transform_4(%arg0: i32, %arg1: i32) -> (i32, i32) {
    %c0_i32 = arith.constant 0 : i32
    %c0_i32_0 = arith.constant 0 : i32
    %c0_i32_1 = arith.constant 0 : i32
    return %c0_i32, %c0_i32_0 : i32, i32
  }
  func.func @transform_5(%arg0: i32, %arg1: i32) -> (i32, i32, i32) {
    %c0_i32 = arith.constant 0 : i32
    %c0_i32_0 = arith.constant 0 : i32
    return %arg0, %c0_i32, %arg1 : i32, i32, i32
  }
  func.func @transform_6(%arg0: i32, %arg1: i32) -> (i32, i32, i32) {
    %c0_i32 = arith.constant 0 : i32
    %c0_i32_0 = arith.constant 0 : i32
    return %arg0, %c0_i32, %arg1 : i32, i32, i32
  }
  func.func @transform_7(%arg0: i32, %arg1: i32) -> (i32, i32, i32) {
    %c0_i32 = arith.constant 0 : i32
    %c0_i32_0 = arith.constant 0 : i32
    %c0_i32_1 = arith.constant 0 : i32
    return %arg0, %c0_i32, %c0_i32_0 : i32, i32, i32
  }
}

module attributes {stable_mosaic.version = 11 : i64} {
  func.func @_c4_stage2_kernel(%arg0: i32, %arg1: i32, %arg2: memref<1x16x256xbf16, #tpu.memory_space<vmem>>, %arg3: memref<1x16x256xbf16, #tpu.memory_space<vmem>>, %arg4: memref<1x16x1xf32, #tpu.memory_space<vmem>>, %arg5: memref<16x16xbf16, #tpu.memory_space<vmem>>, %arg6: memref<16x1xf32, #tpu.memory_space<vmem>>, %arg7: memref<16x16xbf16, #tpu.memory_space<vmem>>, %arg8: memref<1x16x256xf32, #tpu.memory_space<vmem>>) attributes {dimension_semantics = [#tpu.dimension_semantics<parallel>, #tpu.dimension_semantics<parallel>], iteration_bounds = array<i64: 2, 1>, scalar_prefetch = 0 : i64, scratch_operands = 0 : i64, tpu.core_type = #tpu.core_type<tc>, window_params = [{transform_indices = @transform_0, window_bounds = array<i64: 1, 16, 256>}, {transform_indices = @transform_1, window_bounds = array<i64: 1, 16, 256>}, {transform_indices = @transform_2, window_bounds = array<i64: 1, 16, 1>}, {pipeline_mode = #tpu.pipeline_mode<synchronous>, transform_indices = @transform_3, window_bounds = array<i64: 16, 16>}, {pipeline_mode = #tpu.pipeline_mode<synchronous>, transform_indices = @transform_4, window_bounds = array<i64: 16, 1>}, {pipeline_mode = #tpu.pipeline_mode<synchronous>, transform_indices = @transform_5, window_bounds = array<i64: 16, 16>}, {transform_indices = @transform_6, window_bounds = array<i64: 1, 16, 256>}]} {
    %c0 = arith.constant 0 : index
    %c0_0 = arith.constant 0 : index
    %c0_1 = arith.constant 0 : index
    %0 = vector.load %arg2[%c0, %c0_0, %c0_1] : memref<1x16x256xbf16, #tpu.memory_space<vmem>>, vector<1x16x256xbf16>
    %1 = vector.shape_cast %0 : vector<1x16x256xbf16> to vector<16x256xbf16>
    %c0_2 = arith.constant 0 : index
    %c0_3 = arith.constant 0 : index
    %c0_4 = arith.constant 0 : index
    %2 = vector.load %arg3[%c0_2, %c0_3, %c0_4] : memref<1x16x256xbf16, #tpu.memory_space<vmem>>, vector<1x16x256xbf16>
    %3 = vector.shape_cast %2 : vector<1x16x256xbf16> to vector<16x256xbf16>
    %4 = arith.addf %1, %3 : vector<16x256xbf16>
    %c0_5 = arith.constant 0 : index
    %c0_6 = arith.constant 0 : index
    %5 = vector.load %arg5[%c0_5, %c0_6] : memref<16x16xbf16, #tpu.memory_space<vmem>>, vector<16x16xbf16>
    %cst = arith.constant dense<0.000000e+00> : vector<16x256xf32>
    %6 = tpu.matmul %5, %4, %cst {dimension_numbers = #tpu.dot_dimension_numbers<[1], [0], [0], [1], [0, 0, 1, 1], [], []>} : vector<16x16xbf16>, vector<16x256xbf16>, vector<16x256xf32> -> vector<16x256xf32>
    %c0_7 = arith.constant 0 : index
    %c0_8 = arith.constant 0 : index
    %7 = vector.load %arg6[%c0_7, %c0_8] : memref<16x1xf32, #tpu.memory_space<vmem>>, vector<16x1xf32>
    %8 = vector.broadcast %7 : vector<16x1xf32> to vector<16x256xf32>
    %9 = arith.addf %6, %8 : vector<16x256xf32>
    %cst_9 = arith.constant 0.000000e+00 : f32
    %10 = vector.broadcast %cst_9 : f32 to vector<16x256xf32>
    %11 = arith.maximumf %9, %10 : vector<16x256xf32>
    %12 = arith.truncf %11 : vector<16x256xf32> to vector<16x256xbf16>
    %c0_10 = arith.constant 0 : index
    %c0_11 = arith.constant 0 : index
    %13 = vector.load %arg7[%c0_10, %c0_11] : memref<16x16xbf16, #tpu.memory_space<vmem>>, vector<16x16xbf16>
    %cst_12 = arith.constant dense<0.000000e+00> : vector<16x256xf32>
    %14 = tpu.matmul %13, %12, %cst_12 {dimension_numbers = #tpu.dot_dimension_numbers<[1], [0], [0], [1], [0, 0, 1, 1], [], []>} : vector<16x16xbf16>, vector<16x256xbf16>, vector<16x256xf32> -> vector<16x256xf32>
    %c0_13 = arith.constant 0 : index
    %c0_14 = arith.constant 0 : index
    %c0_15 = arith.constant 0 : index
    %15 = vector.load %arg4[%c0_13, %c0_14, %c0_15] : memref<1x16x1xf32, #tpu.memory_space<vmem>>, vector<1x16x1xf32>
    %16 = vector.shape_cast %15 : vector<1x16x1xf32> to vector<16x1xf32>
    %17 = vector.broadcast %16 : vector<16x1xf32> to vector<16x256xf32>
    %18 = arith.addf %14, %17 : vector<16x256xf32>
    %19 = arith.negf %18 : vector<16x256xf32>
    %20 = math.exp %19 : vector<16x256xf32>
    %cst_16 = arith.constant 1.000000e+00 : f32
    %21 = vector.broadcast %cst_16 : f32 to vector<16x256xf32>
    %22 = arith.addf %21, %20 : vector<16x256xf32>
    %23 = arith.divf %21, %22 : vector<16x256xf32>
    %24 = arith.extf %1 : vector<16x256xbf16> to vector<16x256xf32>
    %25 = arith.extf %3 : vector<16x256xbf16> to vector<16x256xf32>
    %26 = arith.subf %24, %25 : vector<16x256xf32>
    %27 = arith.mulf %26, %23 : vector<16x256xf32>
    %28 = arith.addf %25, %27 : vector<16x256xf32>
    %cst_17 = arith.constant 2.000000e+00 : f32
    %29 = vector.broadcast %cst_17 : f32 to vector<16x256xf32>
    %30 = arith.mulf %29, %28 : vector<16x256xf32>
    %c0_18 = arith.constant 0 : index
    %c0_19 = arith.constant 0 : index
    %c0_20 = arith.constant 0 : index
    %31 = vector.load %arg8[%c0_18, %c0_19, %c0_20] : memref<1x16x256xf32, #tpu.memory_space<vmem>>, vector<1x16x256xf32>
    %32 = vector.shape_cast %31 : vector<1x16x256xf32> to vector<16x256xf32>
    %33 = vector.shape_cast %30 : vector<16x256xf32> to vector<1x16x256xf32>
    tpu.vector_store %arg8[%c0_18, %c0_19, %c0_20], %33 {strides = array<i32>} : memref<1x16x256xf32, #tpu.memory_space<vmem>>, vector<1x16x256xf32>,
    return
  }
  func.func @transform_0(%arg0: i32, %arg1: i32) -> (i32, i32, i32) {
    %c0_i32 = arith.constant 0 : i32
    %c0_i32_0 = arith.constant 0 : i32
    return %arg0, %c0_i32, %arg1 : i32, i32, i32
  }
  func.func @transform_1(%arg0: i32, %arg1: i32) -> (i32, i32, i32) {
    %c0_i32 = arith.constant 0 : i32
    %c0_i32_0 = arith.constant 0 : i32
    return %arg0, %c0_i32, %arg1 : i32, i32, i32
  }
  func.func @transform_2(%arg0: i32, %arg1: i32) -> (i32, i32, i32) {
    %c0_i32 = arith.constant 0 : i32
    %c0_i32_0 = arith.constant 0 : i32
    %c0_i32_1 = arith.constant 0 : i32
    return %arg0, %c0_i32, %c0_i32_0 : i32, i32, i32
  }
  func.func @transform_3(%arg0: i32, %arg1: i32) -> (i32, i32) {
    %c0_i32 = arith.constant 0 : i32
    %c0_i32_0 = arith.constant 0 : i32
    %c0_i32_1 = arith.constant 0 : i32
    return %c0_i32, %c0_i32_0 : i32, i32
  }
  func.func @transform_4(%arg0: i32, %arg1: i32) -> (i32, i32) {
    %c0_i32 = arith.constant 0 : i32
    %c0_i32_0 = arith.constant 0 : i32
    %c0_i32_1 = arith.constant 0 : i32
    return %c0_i32, %c0_i32_0 : i32, i32
  }
  func.func @transform_5(%arg0: i32, %arg1: i32) -> (i32, i32) {
    %c0_i32 = arith.constant 0 : i32
    %c0_i32_0 = arith.constant 0 : i32
    %c0_i32_1 = arith.constant 0 : i32
    return %c0_i32, %c0_i32_0 : i32, i32
  }
  func.func @transform_6(%arg0: i32, %arg1: i32) -> (i32, i32, i32) {
    %c0_i32 = arith.constant 0 : i32
    %c0_i32_0 = arith.constant 0 : i32
    return %arg0, %c0_i32, %arg1 : i32, i32, i32
  }
}

</mosaic_0001>

<llo_original>
// kernel: c4_forward.3
$region0: #{c4_forward.3}
  #allocation0 [shape = 'u32[]', space=smem, size = 0x4, offset = 0x4, fixed_abs, tag = 'smem constant byte address 0x4 - core index']
  #allocation1 [shape = 'u32[144,128]{1,0:T(1,128)}', space=vmem, size = 0x12000, scoped, tag = 'internal scratch']
  %s0 = inlined_call_operand.vmem [shape: bf16[2,16,256], index: 0, kind: input, shape index: {}]
  %s1 = inlined_call_operand.vmem [shape: bf16[2,16,256], index: 1, kind: input, shape index: {}]
  %s2 = inlined_call_operand.vmem [shape: f32[2,16,1], index: 2, kind: input, shape index: {}]
  %s3 = inlined_call_operand.vmem [shape: bf16[16,16], index: 3, kind: input, shape index: {}]
  %s4 = inlined_call_operand.vmem [shape: f32[16,1], index: 4, kind: input, shape index: {}]
  %s5 = inlined_call_operand.vmem [shape: bf16[16,16], index: 5, kind: input, shape index: {}]
  %s6 = inlined_call_operand.vmem [shape: f32[2,16,256], index: 6, kind: output, shape index: {}]
  %s7 = sld [smem:[#allocation0]]
  $region57: #{c4_forward.3} parent=0
    _
  %s9 = ssub.s32 1, %s7
  %s10 = scalar_select 0, %s9, %s7
  loop: start=0, step=1, limit=4
  $region2: #{c4_forward.3} parent=0 // loop_pre_header
    _
  $region3: #{c4_forward.3} parent=0 // loop_header
    %s12 = sphi 0, %s16
    %p13 = scmp.ge.s32.totalorder %s12, 4
    %s19 = sphi 0, %s31
    %s20 = sphi 0, %s27
    %s21 = sphi 0, %s19
    %s22 = sphi 0, %s20
    %s23 = sphi 0, %s21
    %s24 = sphi 0, %s22
    %s36 = sphi 0, %s38
    %s39 = sphi 0, %s36
    %s40 = sphi 0, %s39
    %s56 = sphi 0, %s40
    %s64 = sphi 0, %s66
    %s67 = sphi 0, %s64
    %s68 = sphi 0, %s67
    %s84 = sphi 0, %s68
    %s90 = sphi 0, %s92
    %s93 = sphi 0, %s90
    %s94 = sphi 0, %s93
    %s110 = sphi 0, %s94
    %s114 = sphi 0, %s114
    %s116 = sphi 0, %s114
    %s117 = sphi 0, %s116
    %s131 = sphi 0, %s117
    %s135 = sphi 0, %s135
    %s137 = sphi 0, %s135
    %s138 = sphi 0, %s137
    %s152 = sphi 0, %s138
    %s156 = sphi 0, %s156
    %s158 = sphi 0, %s156
    %s159 = sphi 0, %s158
    %s173 = sphi 0, %s159
    %s181 = sphi 0, %s183
    %s184 = sphi 0, %s181
    %s185 = sphi 0, %s184
    %s201 = sphi 0, %s185
  $region4: #{c4_forward.3} parent=0 // loop_header_branch
    %15 = sbr.rel (%p13) target = $region8
  $region5: #{c4_forward.3} parent=0 // loop_body
    %s17 = ssub.s32 %s12, 1
    %s18 = ssub.s32 %s12, 2
    %s25 = sadd.s32 1, %s20
    %p26 = scmp.ge.s32.totalorder %s25, 1
    %s27 = scalar_select %p26, 0, %s25
    %s28 = sadd.s32 1, %s19
    %s29 = scalar_select %p26, %s28, %s19
    %p30 = scmp.ge.s32.totalorder %s29, 2
    %s31 = scalar_select %p30, 0, %s29
    %s32 = ssub.s32 %s19, %s31
    %s33 = ssub.s32 %s20, %s27
    %s34 = sor.u32 %s32, %s33
    %p35 = scmp.eq.s32.totalorder %s34, 0
    %s37 = sadd.s32 %s36, 1
    %s38 = scalar_select %p35, %s36, %s37
    %p41 = pneg %p35
    %p42 = scmp.eq.s32.totalorder %s12, 1
    %p43 = por %p41, %p42
    %p44 = scmp.ne.s32.totalorder %s36, %s39
    %p45 = scmp.eq.s32.totalorder %s12, 0
    %p46 = por %p44, %p45
    %p47 = scmp.ne.s32.totalorder %s36, %s39
    %p48 = scmp.eq.s32.totalorder %s17, 1
    %p49 = por %p47, %p48
    %p50 = scmp.ne.s32.totalorder %s39, %s40
    %p51 = scmp.eq.s32.totalorder %s17, 0
    %p52 = por %p50, %p51
    %p53 = scmp.ne.s32.totalorder %s39, %s40
    %p54 = scmp.eq.s32.totalorder %s18, 1
    %p55 = por %p53, %p54
    %p57 = scmp.ne.s32.totalorder %s40, %s56
    %p58 = scmp.eq.s32.totalorder %s18, 0
    %p59 = por %p57, %p58
    %s60 = ssub.s32 %s19, %s31
    %s61 = ssub.s32 %s20, %s27
    %s62 = sor.u32 %s60, %s61
    %p63 = scmp.eq.s32.totalorder %s62, 0
    %s65 = sadd.s32 %s64, 1
    %s66 = scalar_select %p63, %s64, %s65
    %p69 = pneg %p63
    %p70 = scmp.eq.s32.totalorder %s12, 1
    %p71 = por %p69, %p70
    %p72 = scmp.ne.s32.totalorder %s64, %s67
    %p73 = scmp.eq.s32.totalorder %s12, 0
    %p74 = por %p72, %p73
    %p75 = scmp.ne.s32.totalorder %s64, %s67
    %p76 = scmp.eq.s32.totalorder %s17, 1
    %p77 = por %p75, %p76
    %p78 = scmp.ne.s32.totalorder %s67, %s68
    %p79 = scmp.eq.s32.totalorder %s17, 0
    %p80 = por %p78, %p79
    %p81 = scmp.ne.s32.totalorder %s67, %s68
    %p82 = scmp.eq.s32.totalorder %s18, 1
    %p83 = por %p81, %p82
    %p85 = scmp.ne.s32.totalorder %s68, %s84
    %p86 = scmp.eq.s32.totalorder %s18, 0
    %p87 = por %p85, %p86
    %s88 = ssub.s32 %s19, %s31
    %p89 = scmp.eq.s32.totalorder %s88, 0
    %s91 = sadd.s32 %s90, 1
    %s92 = scalar_select %p89, %s90, %s91
    %p95 = pneg %p89
    %p96 = scmp.eq.s32.totalorder %s12, 1
    %p97 = por %p95, %p96
    %p98 = scmp.ne.s32.totalorder %s90, %s93
    %p99 = scmp.eq.s32.totalorder %s12, 0
    %p100 = por %p98, %p99
    %p101 = scmp.ne.s32.totalorder %s90, %s93
    %p102 = scmp.eq.s32.totalorder %s17, 1
    %p103 = por %p101, %p102
    %p104 = scmp.ne.s32.totalorder %s93, %s94
    %p105 = scmp.eq.s32.totalorder %s17, 0
    %p106 = por %p104, %p105
    %p107 = scmp.ne.s32.totalorder %s93, %s94
    %p108 = scmp.eq.s32.totalorder %s18, 1
    %p109 = por %p107, %p108
    %p111 = scmp.ne.s32.totalorder %s94, %s110
    %p112 = scmp.eq.s32.totalorder %s18, 0
    %p113 = por %p111, %p112
    %s115 = sadd.s32 %s114, 1
    %p118 = scmp.eq.s32.totalorder %s12, 1
    %p119 = scmp.ne.s32.totalorder %s114, %s116
    %p120 = scmp.eq.s32.totalorder %s12, 0
    %p121 = por %p119, %p120
    %p122 = scmp.ne.s32.totalorder %s114, %s116
    %p123 = scmp.eq.s32.totalorder %s17, 1
    %p124 = por %p122, %p123
    %p125 = scmp.ne.s32.totalorder %s116, %s117
    %p126 = scmp.eq.s32.totalorder %s17, 0
    %p127 = por %p125, %p126
    %p128 = scmp.ne.s32.totalorder %s116, %s117
    %p129 = scmp.eq.s32.totalorder %s18, 1
    %p130 = por %p128, %p129
    %p132 = scmp.ne.s32.totalorder %s117, %s131
    %p133 = scmp.eq.s32.totalorder %s18, 0
    %p134 = por %p132, %p133
    %s136 = sadd.s32 %s135, 1
    %p139 = scmp.eq.s32.totalorder %s12, 1
    %p140 = scmp.ne.s32.totalorder %s135, %s137
    %p141 = scmp.eq.s32.totalorder %s12, 0
    %p142 = por %p140, %p141
    %p143 = scmp.ne.s32.totalorder %s135, %s137
    %p144 = scmp.eq.s32.totalorder %s17, 1
    %p145 = por %p143, %p144
    %p146 = scmp.ne.s32.totalorder %s137, %s138
    %p147 = scmp.eq.s32.totalorder %s17, 0
    %p148 = por %p146, %p147
    %p149 = scmp.ne.s32.totalorder %s137, %s138
    %p150 = scmp.eq.s32.totalorder %s18, 1
    %p151 = por %p149, %p150
    %p153 = scmp.ne.s32.totalorder %s138, %s152
    %p154 = scmp.eq.s32.totalorder %s18, 0
    %p155 = por %p153, %p154
    %s157 = sadd.s32 %s156, 1
    %p160 = scmp.eq.s32.totalorder %s12, 1
    %p161 = scmp.ne.s32.totalorder %s156, %s158
    %p162 = scmp.eq.s32.totalorder %s12, 0
    %p163 = por %p161, %p162
    %p164 = scmp.ne.s32.totalorder %s156, %s158
    %p165 = scmp.eq.s32.totalorder %s17, 1
    %p166 = por %p164, %p165
    %p167 = scmp.ne.s32.totalorder %s158, %s159
    %p168 = scmp.eq.s32.totalorder %s17, 0
    %p169 = por %p167, %p168
    %p170 = scmp.ne.s32.totalorder %s158, %s159
    %p171 = scmp.eq.s32.totalorder %s18, 1
    %p172 = por %p170, %p171
    %p174 = scmp.ne.s32.totalorder %s159, %s173
    %p175 = scmp.eq.s32.totalorder %s18, 0
    %p176 = por %p174, %p175
    %s177 = ssub.s32 %s19, %s31
    %s178 = ssub.s32 %s20, %s27
    %s179 = sor.u32 %s177, %s178
    %p180 = scmp.eq.s32.totalorder %s179, 0
    %s182 = sadd.s32 %s181, 1
    %s183 = scalar_select %p180, %s181, %s182
    %p186 = pneg %p180
    %p187 = scmp.eq.s32.totalorder %s12, 1
    %p188 = por %p186, %p187
    %p189 = scmp.ne.s32.totalorder %s181, %s184
    %p190 = scmp.eq.s32.totalorder %s12, 0
    %p191 = por %p189, %p190
    %p192 = scmp.ne.s32.totalorder %s181, %s184
    %p193 = scmp.eq.s32.totalorder %s17, 1
    %p194 = por %p192, %p193
    %p195 = scmp.ne.s32.totalorder %s184, %s185
    %p196 = scmp.eq.s32.totalorder %s17, 0
    %p197 = por %p195, %p196
    %p198 = scmp.ne.s32.totalorder %s184, %s185
    %p199 = scmp.eq.s32.totalorder %s18, 1
    %p200 = por %p198, %p199
    %p202 = scmp.ne.s32.totalorder %s185, %s201
    %p203 = scmp.eq.s32.totalorder %s18, 0
    %p204 = por %p202, %p203
    %p205 = scmp.le.s32.totalorder 1, %s12
    %p206 = scmp.lt.s32.totalorder %s12, 3
    %p207 = pnand %p205, %p206
    %p208 = pneg %p207
    // Predicated region
    $region9: #{c4_forward.3} parent=5 // pred_check
      _
    $region10: #{c4_forward.3} parent=5 // pred_check_branch
      %210 = sbr.rel (%p207) target = $region12
    $region11: #{c4_forward.3} parent=5 // pred_region
      %s211 = ssub.s32 %s12, 1
      // Predicated region
      $region13: #{c4_forward.3} parent=11 // pred_check
        %p212 = pneg %p127
      $region14: #{c4_forward.3} parent=11 // pred_check_branch
        %214 = sbr.rel (%p212) target = $region16
      $region15: #{c4_forward.3} parent=11 // pred_region
        _
      $region16: #{c4_forward.3} parent=11 // pred_fallthru
        _
      // Predicated region
      $region17: #{c4_forward.3} parent=11 // pred_check
        %p215 = pneg %p148
      $region18: #{c4_forward.3} parent=11 // pred_check_branch
        %217 = sbr.rel (%p215) target = $region20
      $region19: #{c4_forward.3} parent=11 // pred_region
        _
      $region20: #{c4_forward.3} parent=11 // pred_fallthru
        _
      // Predicated region
      $region21: #{c4_forward.3} parent=11 // pred_check
        %p218 = pneg %p169
      $region22: #{c4_forward.3} parent=11 // pred_check_branch
        %220 = sbr.rel (%p218) target = $region24
      $region23: #{c4_forward.3} parent=11 // pred_region
        _
      $region24: #{c4_forward.3} parent=11 // pred_fallthru
        _
    $region12: #{c4_forward.3} parent=5 // pred_fallthru
      _
    %p221 = scmp.lt.s32.totalorder %s12, 2
    // Predicated region
    $region25: #{c4_forward.3} parent=5 // pred_check
      %p222 = pneg %p221
    $region26: #{c4_forward.3} parent=5 // pred_check_branch
      %224 = sbr.rel (%p222) target = $region28
    $region27: #{c4_forward.3} parent=5 // pred_region
      // Predicated region
      $region29: #{c4_forward.3} parent=27 // pred_check
        %p225 = pneg %p46
      $region30: #{c4_forward.3} parent=27 // pred_check_branch
        %227 = sbr.rel (%p225) target = $region32
      $region31: #{c4_forward.3} parent=27 // pred_region
        %s228 = smul.u32 2, %s20
        %p229 = scmp.lt.s32.totalorder %s19, 1
        %s230 = scalar_select %p229, %s19, 1
        %p231 = scmp.lt.s32.totalorder %s228, 1
        %s232 = scalar_select %p231, %s228, 1
        %s233 = smul.addr %s230, 4
        %s234 = sadd.s32 %s232, %s233
        %s235 = smul.addr %s234, 4
        %s236 = scalar_lea.vmem %s0, %s235
        %s237 = smul.u32 2, %s20
      $region32: #{c4_forward.3} parent=27 // pred_fallthru
        _
      // Predicated region
      $region33: #{c4_forward.3} parent=27 // pred_check
        %p238 = pneg %p74
      $region34: #{c4_forward.3} parent=27 // pred_check_branch
        %240 = sbr.rel (%p238) target = $region36
      $region35: #{c4_forward.3} parent=27 // pred_region
        %s241 = smul.u32 2, %s20
        %p242 = scmp.lt.s32.totalorder %s19, 1
        %s243 = scalar_select %p242, %s19, 1
        %p244 = scmp.lt.s32.totalorder %s241, 1
        %s245 = scalar_select %p244, %s241, 1
        %s246 = smul.addr %s243, 4
        %s247 = sadd.s32 %s245, %s246
        %s248 = smul.addr %s247, 4
        %s249 = scalar_lea.vmem %s1, %s248
        %s250 = smul.u32 2, %s20
      $region36: #{c4_forward.3} parent=27 // pred_fallthru
        _
      // Predicated region
      $region37: #{c4_forward.3} parent=27 // pred_check
        %p251 = pneg %p100
      $region38: #{c4_forward.3} parent=27 // pred_check_branch
        %253 = sbr.rel (%p251) target = $region40
      $region39: #{c4_forward.3} parent=27 // pred_region
        %p254 = scmp.lt.s32.totalorder %s19, 1
        %s255 = scalar_select %p254, %s19, 1
        %s256 = smul.addr %s255, 2
        %s257 = smul.addr %s256, 8
        %s258 = scalar_lea.vmem %s2, %s257
      $region40: #{c4_forward.3} parent=27 // pred_fallthru
        _
    $region28: #{c4_forward.3} parent=5 // pred_fallthru
      _
    %p259 = scmp.le.s32.totalorder 1, %s12
    %p260 = scmp.lt.s32.totalorder %s12, 3
    %p261 = pnand %p259, %p260
    %p262 = pneg %p261
    // Predicated region
    $region41: #{c4_forward.3} parent=5 // pred_check
      _
    $region42: #{c4_forward.3} parent=5 // pred_check_branch
      %264 = sbr.rel (%p261) target = $region44
    $region43: #{c4_forward.3} parent=5 // pred_region
      %s265 = ssub.s32 %s12, 1
      %s266 = smul.u32 2, %s22
      %p267 = scmp.lt.s32.totalorder %s21, 1
      %s268 = scalar_select %p267, %s21, 1
      %p269 = scmp.lt.s32.totalorder %s266, 1
      %s270 = scalar_select %p269, %s266, 1
      %s271 = smul.addr %s268, 4
      %s272 = sadd.s32 %s270, %s271
      %s273 = smul.addr %s272, 4
      %s274 = scalar_lea.vmem %s0, %s273
      %p275 = pneg %p52
      %p276 = pneg %p49
      %s277 = smul.u32 2, %s22
      %p278 = scmp.lt.s32.totalorder %s21, 1
      %s279 = scalar_select %p278, %s21, 1
      %p280 = scmp.lt.s32.totalorder %s277, 1
      %s281 = scalar_select %p280, %s277, 1
      %s282 = smul.addr %s279, 4
      %s283 = sadd.s32 %s281, %s282
      %s284 = smul.addr %s283, 4
      %s285 = scalar_lea.vmem %s1, %s284
      %p286 = pneg %p80
      %p287 = pneg %p77
      %p288 = scmp.lt.s32.totalorder %s21, 1
      %s289 = scalar_select %p288, %s21, 1
      %s290 = smul.addr %s289, 2
      %s291 = smul.addr %s290, 8
      %s292 = scalar_lea.vmem %s2, %s291
      %p293 = pneg %p106
      %p294 = pneg %p103
      %p295 = pneg %p127
      %p296 = pneg %p124
      %p297 = pneg %p148
      %p298 = pneg %p145
      %p299 = pneg %p169
      %p300 = pneg %p166
      %p301 = pneg %p197
      %p302 = pneg %p194
      %s303 = smul.u32 2, %s22
      %p304 = scmp.lt.s32.totalorder %s21, 1
      %s305 = scalar_select %p304, %s21, 1
      %p306 = scmp.lt.s32.totalorder %s303, 1
      %s307 = scalar_select %p306, %s303, 1
      %s308 = smul.addr %s305, 4
      %s309 = sadd.s32 %s307, %s308
      %s310 = smul.addr %s309, 8
      %s311 = scalar_lea.vmem %s6, %s310
      %s312 = smul.u32 2, %s22
      %p313 = scmp.lt.s32.totalorder %s21, 1
      %s314 = scalar_select %p313, %s21, 1
      %p315 = scmp.lt.s32.totalorder %s312, 1
      %s316 = scalar_select %p315, %s312, 1
      %s317 = smul.addr %s314, 4
      %s318 = sadd.s32 %s316, %s317
      %s319 = smul.addr %s318, 4
      %s320 = scalar_lea.vmem %s0, %s319
      %s321 = smul.u32 2, %s22
      %s322 = smul.u32 2, %s22
      %p323 = scmp.lt.s32.totalorder %s21, 1
      %s324 = scalar_select %p323, %s21, 1
      %p325 = scmp.lt.s32.totalorder %s322, 1
      %s326 = scalar_select %p325, %s322, 1
      %s327 = smul.addr %s324, 4
      %s328 = sadd.s32 %s326, %s327
      %s329 = smul.addr %s328, 4
      %s330 = scalar_lea.vmem %s1, %s329
      %s331 = smul.u32 2, %s22
      %p332 = scmp.lt.s32.totalorder %s21, 1
      %s333 = scalar_select %p332, %s21, 1
      %s334 = smul.addr %s333, 2
      %s335 = smul.addr %s334, 8
      %s336 = scalar_lea.vmem %s2, %s335
      %s337 = smul.u32 2, %s22
      %p338 = scmp.lt.s32.totalorder %s21, 1
      %s339 = scalar_select %p338, %s21, 1
      %p340 = scmp.lt.s32.totalorder %s337, 1
      %s341 = scalar_select %p340, %s337, 1
      %s342 = smul.addr %s339, 4
      %s343 = sadd.s32 %s341, %s342
      %s344 = smul.addr %s343, 8
      %s345 = scalar_lea.vmem %s6, %s344
      %s346 = smul.u32 2, %s22
      %v348 = vld [vmem:[%s320] sm:$0xff]
      %v349 = vld [vmem:[%s320 + $0x8] sm:$0xff]
      %v350 = vld [vmem:[%s330] sm:$0xff]
      %v351 = vld [vmem:[%s330 + $0x8] sm:$0xff]
      %v352 = vadd.bf16 %v348, %v350
      %v353 = vadd.bf16 %v349, %v351
      %v354 = vld [vmem:[%s3] sm:$0xf]
      %v355 = vld [vmem:[%s3 + $0x4] sm:$0xf]
      %v356 = vld [vmem:[%s4] sm:$0xff]
      %v357 = vld [vmem:[%s4 + $0x8] sm:$0xff]
      %359 = vset.pattern.permute.xlu0 0
      %360 = vperm.xlu0 %359, %v356
      %v361 = vpop.permute.xlu0 %360
      %364 = vset.pattern.permute.xlu0 0
      %365 = vperm.xlu0 %364, %v357
      %v366 = vpop.permute.xlu0 %365
      %v370 = vunpack.c.l.b16 %v354
      %v371 = vunpack.c.l.b16 %v355
      %v372 = vpack.c.b16 %v371, %v370
      %v375 = vunpack.c.l.b16 %v352
      %v376 = vunpack.c.h.b16 %v352
      %v377 = vunpack.c.l.b16 %v353
      %v378 = vunpack.c.h.b16 %v353
      %v379 = vpack.c.b16 %v377, %v375
      %v380 = vpack.c.b16 %v378, %v376
      %vm383 = vcmask 130048
      %v385 = vsel %vm383, %v372, 0
      %387 = vmatprep.subr.bf16.mxu0 %v380
      %388 = vmatpush1.bf16.msra.mxu0 %v379
      %389 = vmatprep.subr.bf16.mxu0 0
      %390 = vmatpush1.bf16.msra.mxu0 0
      %391 = vmatprep.subr.bf16.mxu0 0
      %392 = vmatpush1.bf16.msra.mxu0 0
      %393 = vmatprep.subr.bf16.mxu0 0
      %394 = vmatpush1.bf16.msra.mxu0 0
      %395 = vmatprep.subr.bf16.mxu0 0
      %396 = vmatpush1.bf16.msra.mxu0 0
      %397 = vmatprep.subr.bf16.mxu0 0
      %398 = vmatpush1.bf16.msra.mxu0 0
      %399 = vmatprep.subr.bf16.mxu0 0
      %400 = vmatpush1.bf16.msra.mxu0 0
      %401 = vmatprep.subr.bf16.mxu0 0
      %402 = vmatpush1.bf16.msra.mxu0 0
      %403 = vmatprep.subr.bf16.mxu0 0
      %404 = vmatpush1.bf16.msra.mxu0 0
      %405 = vmatprep.subr.bf16.mxu0 0
      %406 = vmatpush1.bf16.msra.mxu0 0
      %407 = vmatprep.subr.bf16.mxu0 0
      %408 = vmatpush1.bf16.msra.mxu0 0
      %409 = vmatprep.subr.bf16.mxu0 0
      %410 = vmatpush1.bf16.msra.mxu0 0
      %411 = vmatprep.subr.bf16.mxu0 0
      %412 = vmatpush1.bf16.msra.mxu0 0
      %413 = vmatprep.subr.bf16.mxu0 0
      %414 = vmatpush1.bf16.msra.mxu0 0
      %415 = vmatprep.subr.bf16.mxu0 0
      %416 = vmatpush1.bf16.msra.mxu0 0
      %417 = vmatprep.subr.bf16.mxu0 0
      %418 = vmatpush1.bf16.msra.mxu0 0
      %419 = vmatprep.mubr.bf16.mxu0 0
      %420 = vmatmul.mubr.bf16.gmra.mrb[0].mxu0 %v385
      %v421 = vpop.f32.mrb[0].mxu0
      %v422 = vadd.f32 %v361, %v421
      %v423 = vpop.f32.mrb[0].mxu0
      %v424 = vadd.f32 %v361, %v423
      %v425 = vpop.f32.mrb[0].mxu0
      %v426 = vadd.f32 %v366, %v425
      %v427 = vpop.f32.mrb[0].mxu0
      %v428 = vadd.f32 %v366, %v427
      %429 = vdwg.mxu0
      %v430 = vmax.f32 %v422, 0.0
      %v431 = vmax.f32 %v424, 0.0
      %v432 = vmax.f32 %v426, 0.0
      %v433 = vmax.f32 %v428, 0.0
      %v434 = vpack.c.bf16 %v432, %v430
      %v435 = vpack.c.bf16 %v433, %v431
      %v436 = vld [vmem:[%s5] sm:$0xf]
      %v437 = vld [vmem:[%s5 + $0x4] sm:$0xf]
      %v438 = vld [vmem:[%s336] sm:$0xff]
      %v439 = vld [vmem:[%s336 + $0x8] sm:$0xff]
      %441 = vset.pattern.permute.xlu0 0
      %442 = vperm.xlu0 %441, %v438
      %v443 = vpop.permute.xlu0 %442
      %446 = vset.pattern.permute.xlu0 0
      %447 = vperm.xlu0 %446, %v439
      %v448 = vpop.permute.xlu0 %447
      %v452 = vunpack.c.l.b16 %v436
      %v453 = vunpack.c.l.b16 %v437
      %v454 = vpack.c.b16 %v453, %v452
      %v456 = vsel %vm383, %v454, 0
      %458 = vmatprep.subr.bf16.mxu0 %v435
      %459 = vmatpush1.bf16.msra.mxu0 %v434
      %460 = vmatprep.subr.bf16.mxu0 0
      %461 = vmatpush1.bf16.msra.mxu0 0
      %462 = vmatprep.subr.bf16.mxu0 0
      %463 = vmatpush1.bf16.msra.mxu0 0
      %464 = vmatprep.subr.bf16.mxu0 0
      %465 = vmatpush1.bf16.msra.mxu0 0
      %466 = vmatprep.subr.bf16.mxu0 0
      %467 = vmatpush1.bf16.msra.mxu0 0
      %468 = vmatprep.subr.bf16.mxu0 0
      %469 = vmatpush1.bf16.msra.mxu0 0
      %470 = vmatprep.subr.bf16.mxu0 0
      %471 = vmatpush1.bf16.msra.mxu0 0
      %472 = vmatprep.subr.bf16.mxu0 0
      %473 = vmatpush1.bf16.msra.mxu0 0
      %474 = vmatprep.subr.bf16.mxu0 0
      %475 = vmatpush1.bf16.msra.mxu0 0
      %476 = vmatprep.subr.bf16.mxu0 0
      %477 = vmatpush1.bf16.msra.mxu0 0
      %478 = vmatprep.subr.bf16.mxu0 0
      %479 = vmatpush1.bf16.msra.mxu0 0
      %480 = vmatprep.subr.bf16.mxu0 0
      %481 = vmatpush1.bf16.msra.mxu0 0
      %482 = vmatprep.subr.bf16.mxu0 0
      %483 = vmatpush1.bf16.msra.mxu0 0
      %484 = vmatprep.subr.bf16.mxu0 0
      %485 = vmatpush1.bf16.msra.mxu0 0
      %486 = vmatprep.subr.bf16.mxu0 0
      %487 = vmatpush1.bf16.msra.mxu0 0
      %488 = vmatprep.subr.bf16.mxu0 0
      %489 = vmatpush1.bf16.msra.mxu0 0
      %490 = vmatprep.mubr.bf16.mxu0 0
      %491 = vmatmul.mubr.bf16.gmra.mrb[0].mxu0 %v456
      %v492 = vpop.f32.mrb[0].mxu0
      %v493 = vadd.f32 %v443, %v492
      %v494 = vpop.f32.mrb[0].mxu0
      %v495 = vadd.f32 %v443, %v494
      %v496 = vpop.f32.mrb[0].mxu0
      %v497 = vadd.f32 %v448, %v496
      %v498 = vpop.f32.mrb[0].mxu0
      %v499 = vadd.f32 %v448, %v498
      %500 = vdwg.mxu0
      %v501 = vxor.u32 %v493, 2147483648
      %v502 = vxor.u32 %v495, 2147483648
      %v503 = vxor.u32 %v497, 2147483648
      %v504 = vxor.u32 %v499, 2147483648
      %v505 = vmul.f32 %v501, 1.442695
      %v506 = vpow.pop %v505
      %v507 = vmul.f32 %v502, 1.442695
      %v508 = vpow.pop %v507
      %v509 = vmul.f32 %v503, 1.442695
      %v510 = vpow.pop %v509
      %v511 = vmul.f32 %v504, 1.442695
      %v512 = vpow.pop %v511
      %v513 = vadd.f32 %v506, 1.0
      %v514 = vadd.f32 %v508, 1.0
      %v515 = vadd.f32 %v510, 1.0
      %v516 = vadd.f32 %v512, 1.0
      %v517 = vrcp.pop %v513
      %v518 = vmul.f32 1.0, %v517
      %v519 = vrcp.pop %v514
      %v520 = vmul.f32 1.0, %v519
      %v521 = vrcp.pop %v515
      %v522 = vmul.f32 1.0, %v521
      %v523 = vrcp.pop %v516
      %v524 = vmul.f32 1.0, %v523
      %v525 = vunpack.c.l.bf16 %v348
      %v526 = vunpack.c.h.bf16 %v348
      %v527 = vunpack.c.l.bf16 %v349
      %v528 = vunpack.c.h.bf16 %v349
      %v529 = vunpack.c.l.bf16 %v350
      %v530 = vunpack.c.h.bf16 %v350
      %v531 = vunpack.c.l.bf16 %v351
      %v532 = vunpack.c.h.bf16 %v351
      %v533 = vsub.f32 %v525, %v529
      %v534 = vsub.f32 %v526, %v530
      %v535 = vsub.f32 %v527, %v531
      %v536 = vsub.f32 %v528, %v532
      %v537 = vmul.f32 %v533, %v518
      %v538 = vmul.f32 %v534, %v520
      %v539 = vmul.f32 %v535, %v522
      %v540 = vmul.f32 %v536, %v524
      %v541 = vadd.f32 %v529, %v537
      %v542 = vadd.f32 %v530, %v538
      %v543 = vadd.f32 %v531, %v539
      %v544 = vadd.f32 %v532, %v540
      %v545 = vmul.f32 %v541, 2.0
      %v546 = vmul.f32 %v542, 2.0
      %v547 = vmul.f32 %v543, 2.0
      %v548 = vmul.f32 %v544, 2.0
      %549 = vst [vmem:[%s345] sm:$0xff] %v545
      %550 = vst [vmem:[%s345 + $0x8] sm:$0xff] %v546
      %551 = vst [vmem:[%s345 + $0x10] sm:$0xff] %v547
      %552 = vst [vmem:[%s345 + $0x18] sm:$0xff] %v548
      %s553 = smul.u32 2, %s22
      %p554 = scmp.lt.s32.totalorder %s21, 1
      %s555 = scalar_select %p554, %s21, 1
      %p556 = scmp.lt.s32.totalorder %s553, 1
      %s557 = scalar_select %p556, %s553, 1
      %s558 = smul.addr %s555, 4
      %s559 = sadd.s32 %s557, %s558
      %s560 = smul.addr %s559, 8
      %s561 = scalar_lea.vmem %s6, %s560
      // Predicated region
      $region45: #{c4_forward.3} parent=43 // pred_check
        %p562 = pneg %p194
      $region46: #{c4_forward.3} parent=43 // pred_check_branch
        %564 = sbr.rel (%p562) target = $region48
      $region47: #{c4_forward.3} parent=43 // pred_region
        %s565 = smul.u32 2, %s22
      $region48: #{c4_forward.3} parent=43 // pred_fallthru
        _
    $region44: #{c4_forward.3} parent=5 // pred_fallthru
      _
    %p566 = scmp.le.s32.totalorder 2, %s12
    // Predicated region
    $region49: #{c4_forward.3} parent=5 // pred_check
      %p567 = pneg %p566
    $region50: #{c4_forward.3} parent=5 // pred_check_branch
      %569 = sbr.rel (%p567) target = $region52
    $region51: #{c4_forward.3} parent=5 // pred_region
      %s570 = ssub.s32 %s12, 2
      // Predicated region
      $region53: #{c4_forward.3} parent=51 // pred_check
        %p571 = pneg %p200
      $region54: #{c4_forward.3} parent=51 // pred_check_branch
        %573 = sbr.rel (%p571) target = $region56
      $region55: #{c4_forward.3} parent=51 // pred_region
        %s574 = smul.u32 2, %s24
        %p575 = scmp.lt.s32.totalorder %s23, 1
        %s576 = scalar_select %p575, %s23, 1
        %p577 = scmp.lt.s32.totalorder %s574, 1
        %s578 = scalar_select %p577, %s574, 1
        %s579 = smul.addr %s576, 4
        %s580 = sadd.s32 %s578, %s579
        %s581 = smul.addr %s580, 8
        %s582 = scalar_lea.vmem %s6, %s581
      $region56: #{c4_forward.3} parent=51 // pred_fallthru
        _
    $region52: #{c4_forward.3} parent=5 // pred_fallthru
      _
  $region6: #{c4_forward.3} parent=0 // loop_footer
    %s16 = sadd.s32 1, %s12
  $region7: #{c4_forward.3} parent=0 // loop_footer_branch
    %11 = sbr.rel target = $region3
  $region8: #{c4_forward.3} parent=0 // loop_exit
    _

// kernel: c4_forward.2
$region0: #{c4_forward.2}
  #allocation0 [shape = 'u32[]', space=smem, size = 0x4, offset = 0x4, fixed_abs, tag = 'smem constant byte address 0x4 - core index']
  #allocation1 [shape = 'u32[144,128]{1,0:T(1,128)}', space=vmem, size = 0x12000, scoped, tag = 'internal scratch']
  #allocation2 [shape = 'bf16[32,256]{1,0:T(16,128)(2,1)}', space=vmem, size = 0x4000, scoped, tag = 'scratch operand']
  %s0 = inlined_call_operand.vmem [shape: bf16[2,16,256], index: 0, kind: input, shape index: {}]
  %s1 = inlined_call_operand.vmem [shape: bf16[2,16,256], index: 1, kind: input, shape index: {}]
  %s2 = inlined_call_operand.vmem [shape: bf16[2,48,16], index: 2, kind: input, shape index: {}]
  %s3 = inlined_call_operand.vmem [shape: bf16[64,32], index: 3, kind: input, shape index: {}]
  %s4 = inlined_call_operand.vmem [shape: f32[160,1], index: 4, kind: input, shape index: {}]
  %s5 = inlined_call_operand.vmem [shape: bf16[2,16,256], index: 5, kind: output, shape index: {0}]
  %s6 = inlined_call_operand.vmem [shape: bf16[2,16,256], index: 6, kind: output, shape index: {1}]
  %s7 = inlined_call_operand.vmem [shape: f32[2,16,1], index: 7, kind: output, shape index: {2}]
  %8 = xla_tuple %s5, %s6, %s7
  %s9 = sld [smem:[#allocation0]]
  $region73: #{c4_forward.2} parent=0
    _
  %s11 = ssub.s32 1, %s9
  %s12 = scalar_select 0, %s11, %s9
  loop: start=0, step=1, limit=4
  $region2: #{c4_forward.2} parent=0 // loop_pre_header
    _
  $region3: #{c4_forward.2} parent=0 // loop_header
    %s14 = sphi 0, %s18
    %p15 = scmp.ge.s32.totalorder %s14, 4
    %s21 = sphi 0, %s33
    %s22 = sphi 0, %s29
    %s23 = sphi 0, %s21
    %s24 = sphi 0, %s22
    %s25 = sphi 0, %s23
    %s26 = sphi 0, %s24
    %s38 = sphi 0, %s40
    %s41 = sphi 0, %s38
    %s42 = sphi 0, %s41
    %s58 = sphi 0, %s42
    %s66 = sphi 0, %s68
    %s69 = sphi 0, %s66
    %s70 = sphi 0, %s69
    %s86 = sphi 0, %s70
    %s90 = sphi 0, %s90
    %s92 = sphi 0, %s90
    %s93 = sphi 0, %s92
    %s107 = sphi 0, %s93
    %s111 = sphi 0, %s111
    %s113 = sphi 0, %s111
    %s114 = sphi 0, %s113
    %s128 = sphi 0, %s114
    %s132 = sphi 0, %s132
    %s134 = sphi 0, %s132
    %s135 = sphi 0, %s134
    %s149 = sphi 0, %s135
    %s157 = sphi 0, %s159
    %s160 = sphi 0, %s157
    %s161 = sphi 0, %s160
    %s177 = sphi 0, %s161
    %s185 = sphi 0, %s187
    %s188 = sphi 0, %s185
    %s189 = sphi 0, %s188
    %s205 = sphi 0, %s189
    %s211 = sphi 0, %s213
    %s214 = sphi 0, %s211
    %s215 = sphi 0, %s214
    %s231 = sphi 0, %s215
  $region4: #{c4_forward.2} parent=0 // loop_header_branch
    %17 = sbr.rel (%p15) target = $region8
  $region5: #{c4_forward.2} parent=0 // loop_body
    %s19 = ssub.s32 %s14, 1
    %s20 = ssub.s32 %s14, 2
    %s27 = sadd.s32 1, %s22
    %p28 = scmp.ge.s32.totalorder %s27, 1
    %s29 = scalar_select %p28, 0, %s27
    %s30 = sadd.s32 1, %s21
    %s31 = scalar_select %p28, %s30, %s21
    %p32 = scmp.ge.s32.totalorder %s31, 2
    %s33 = scalar_select %p32, 0, %s31
    %s34 = ssub.s32 %s21, %s33
    %s35 = ssub.s32 %s22, %s29
    %s36 = sor.u32 %s34, %s35
    %p37 = scmp.eq.s32.totalorder %s36, 0
    %s39 = sadd.s32 %s38, 1
    %s40 = scalar_select %p37, %s38, %s39
    %p43 = pneg %p37
    %p44 = scmp.eq.s32.totalorder %s14, 1
    %p45 = por %p43, %p44
    %p46 = scmp.ne.s32.totalorder %s38, %s41
    %p47 = scmp.eq.s32.totalorder %s14, 0
    %p48 = por %p46, %p47
    %p49 = scmp.ne.s32.totalorder %s38, %s41
    %p50 = scmp.eq.s32.totalorder %s19, 1
    %p51 = por %p49, %p50
    %p52 = scmp.ne.s32.totalorder %s41, %s42
    %p53 = scmp.eq.s32.totalorder %s19, 0
    %p54 = por %p52, %p53
    %p55 = scmp.ne.s32.totalorder %s41, %s42
    %p56 = scmp.eq.s32.totalorder %s20, 1
    %p57 = por %p55, %p56
    %p59 = scmp.ne.s32.totalorder %s42, %s58
    %p60 = scmp.eq.s32.totalorder %s20, 0
    %p61 = por %p59, %p60
    %s62 = ssub.s32 %s21, %s33
    %s63 = ssub.s32 %s22, %s29
    %s64 = sor.u32 %s62, %s63
    %p65 = scmp.eq.s32.totalorder %s64, 0
    %s67 = sadd.s32 %s66, 1
    %s68 = scalar_select %p65, %s66, %s67
    %p71 = pneg %p65
    %p72 = scmp.eq.s32.totalorder %s14, 1
    %p73 = por %p71, %p72
    %p74 = scmp.ne.s32.totalorder %s66, %s69
    %p75 = scmp.eq.s32.totalorder %s14, 0
    %p76 = por %p74, %p75
    %p77 = scmp.ne.s32.totalorder %s66, %s69
    %p78 = scmp.eq.s32.totalorder %s19, 1
    %p79 = por %p77, %p78
    %p80 = scmp.ne.s32.totalorder %s69, %s70
    %p81 = scmp.eq.s32.totalorder %s19, 0
    %p82 = por %p80, %p81
    %p83 = scmp.ne.s32.totalorder %s69, %s70
    %p84 = scmp.eq.s32.totalorder %s20, 1
    %p85 = por %p83, %p84
    %p87 = scmp.ne.s32.totalorder %s70, %s86
    %p88 = scmp.eq.s32.totalorder %s20, 0
    %p89 = por %p87, %p88
    %s91 = sadd.s32 %s90, 1
    %p94 = scmp.eq.s32.totalorder %s14, 1
    %p95 = scmp.ne.s32.totalorder %s90, %s92
    %p96 = scmp.eq.s32.totalorder %s14, 0
    %p97 = por %p95, %p96
    %p98 = scmp.ne.s32.totalorder %s90, %s92
    %p99 = scmp.eq.s32.totalorder %s19, 1
    %p100 = por %p98, %p99
    %p101 = scmp.ne.s32.totalorder %s92, %s93
    %p102 = scmp.eq.s32.totalorder %s19, 0
    %p103 = por %p101, %p102
    %p104 = scmp.ne.s32.totalorder %s92, %s93
    %p105 = scmp.eq.s32.totalorder %s20, 1
    %p106 = por %p104, %p105
    %p108 = scmp.ne.s32.totalorder %s93, %s107
    %p109 = scmp.eq.s32.totalorder %s20, 0
    %p110 = por %p108, %p109
    %s112 = sadd.s32 %s111, 1
    %p115 = scmp.eq.s32.totalorder %s14, 1
    %p116 = scmp.ne.s32.totalorder %s111, %s113
    %p117 = scmp.eq.s32.totalorder %s14, 0
    %p118 = por %p116, %p117
    %p119 = scmp.ne.s32.totalorder %s111, %s113
    %p120 = scmp.eq.s32.totalorder %s19, 1
    %p121 = por %p119, %p120
    %p122 = scmp.ne.s32.totalorder %s113, %s114
    %p123 = scmp.eq.s32.totalorder %s19, 0
    %p124 = por %p122, %p123
    %p125 = scmp.ne.s32.totalorder %s113, %s114
    %p126 = scmp.eq.s32.totalorder %s20, 1
    %p127 = por %p125, %p126
    %p129 = scmp.ne.s32.totalorder %s114, %s128
    %p130 = scmp.eq.s32.totalorder %s20, 0
    %p131 = por %p129, %p130
    %s133 = sadd.s32 %s132, 1
    %p136 = scmp.eq.s32.totalorder %s14, 1
    %p137 = scmp.ne.s32.totalorder %s132, %s134
    %p138 = scmp.eq.s32.totalorder %s14, 0
    %p139 = por %p137, %p138
    %p140 = scmp.ne.s32.totalorder %s132, %s134
    %p141 = scmp.eq.s32.totalorder %s19, 1
    %p142 = por %p140, %p141
    %p143 = scmp.ne.s32.totalorder %s134, %s135
    %p144 = scmp.eq.s32.totalorder %s19, 0
    %p145 = por %p143, %p144
    %p146 = scmp.ne.s32.totalorder %s134, %s135
    %p147 = scmp.eq.s32.totalorder %s20, 1
    %p148 = por %p146, %p147
    %p150 = scmp.ne.s32.totalorder %s135, %s149
    %p151 = scmp.eq.s32.totalorder %s20, 0
    %p152 = por %p150, %p151
    %s153 = ssub.s32 %s21, %s33
    %s154 = ssub.s32 %s22, %s29
    %s155 = sor.u32 %s153, %s154
    %p156 = scmp.eq.s32.totalorder %s155, 0
    %s158 = sadd.s32 %s157, 1
    %s159 = scalar_select %p156, %s157, %s158
    %p162 = pneg %p156
    %p163 = scmp.eq.s32.totalorder %s14, 1
    %p164 = por %p162, %p163
    %p165 = scmp.ne.s32.totalorder %s157, %s160
    %p166 = scmp.eq.s32.totalorder %s14, 0
    %p167 = por %p165, %p166
    %p168 = scmp.ne.s32.totalorder %s157, %s160
    %p169 = scmp.eq.s32.totalorder %s19, 1
    %p170 = por %p168, %p169
    %p171 = scmp.ne.s32.totalorder %s160, %s161
    %p172 = scmp.eq.s32.totalorder %s19, 0
    %p173 = por %p171, %p172
    %p174 = scmp.ne.s32.totalorder %s160, %s161
    %p175 = scmp.eq.s32.totalorder %s20, 1
    %p176 = por %p174, %p175
    %p178 = scmp.ne.s32.totalorder %s161, %s177
    %p179 = scmp.eq.s32.totalorder %s20, 0
    %p180 = por %p178, %p179
    %s181 = ssub.s32 %s21, %s33
    %s182 = ssub.s32 %s22, %s29
    %s183 = sor.u32 %s181, %s182
    %p184 = scmp.eq.s32.totalorder %s183, 0
    %s186 = sadd.s32 %s185, 1
    %s187 = scalar_select %p184, %s185, %s186
    %p190 = pneg %p184
    %p191 = scmp.eq.s32.totalorder %s14, 1
    %p192 = por %p190, %p191
    %p193 = scmp.ne.s32.totalorder %s185, %s188
    %p194 = scmp.eq.s32.totalorder %s14, 0
    %p195 = por %p193, %p194
    %p196 = scmp.ne.s32.totalorder %s185, %s188
    %p197 = scmp.eq.s32.totalorder %s19, 1
    %p198 = por %p196, %p197
    %p199 = scmp.ne.s32.totalorder %s188, %s189
    %p200 = scmp.eq.s32.totalorder %s19, 0
    %p201 = por %p199, %p200
    %p202 = scmp.ne.s32.totalorder %s188, %s189
    %p203 = scmp.eq.s32.totalorder %s20, 1
    %p204 = por %p202, %p203
    %p206 = scmp.ne.s32.totalorder %s189, %s205
    %p207 = scmp.eq.s32.totalorder %s20, 0
    %p208 = por %p206, %p207
    %s209 = ssub.s32 %s21, %s33
    %p210 = scmp.eq.s32.totalorder %s209, 0
    %s212 = sadd.s32 %s211, 1
    %s213 = scalar_select %p210, %s211, %s212
    %p216 = pneg %p210
    %p217 = scmp.eq.s32.totalorder %s14, 1
    %p218 = por %p216, %p217
    %p219 = scmp.ne.s32.totalorder %s211, %s214
    %p220 = scmp.eq.s32.totalorder %s14, 0
    %p221 = por %p219, %p220
    %p222 = scmp.ne.s32.totalorder %s211, %s214
    %p223 = scmp.eq.s32.totalorder %s19, 1
    %p224 = por %p222, %p223
    %p225 = scmp.ne.s32.totalorder %s214, %s215
    %p226 = scmp.eq.s32.totalorder %s19, 0
    %p227 = por %p225, %p226
    %p228 = scmp.ne.s32.totalorder %s214, %s215
    %p229 = scmp.eq.s32.totalorder %s20, 1
    %p230 = por %p228, %p229
    %p232 = scmp.ne.s32.totalorder %s215, %s231
    %p233 = scmp.eq.s32.totalorder %s20, 0
    %p234 = por %p232, %p233
    %p235 = scmp.le.s32.totalorder 1, %s14
    %p236 = scmp.lt.s32.totalorder %s14, 3
    %p237 = pnand %p235, %p236
    %p238 = pneg %p237
    // Predicated region
    $region9: #{c4_forward.2} parent=5 // pred_check
      _
    $region10: #{c4_forward.2} parent=5 // pred_check_branch
      %240 = sbr.rel (%p237) target = $region12
    $region11: #{c4_forward.2} parent=5 // pred_region
      %s241 = ssub.s32 %s14, 1
      // Predicated region
      $region13: #{c4_forward.2} parent=11 // pred_check
        %p242 = pneg %p103
      $region14: #{c4_forward.2} parent=11 // pred_check_branch
        %244 = sbr.rel (%p242) target = $region16
      $region15: #{c4_forward.2} parent=11 // pred_region
        _
      $region16: #{c4_forward.2} parent=11 // pred_fallthru
        _
      // Predicated region
      $region17: #{c4_forward.2} parent=11 // pred_check
        %p245 = pneg %p124
      $region18: #{c4_forward.2} parent=11 // pred_check_branch
        %247 = sbr.rel (%p245) target = $region20
      $region19: #{c4_forward.2} parent=11 // pred_region
        _
      $region20: #{c4_forward.2} parent=11 // pred_fallthru
        _
      // Predicated region
      $region21: #{c4_forward.2} parent=11 // pred_check
        %p248 = pneg %p145
      $region22: #{c4_forward.2} parent=11 // pred_check_branch
        %250 = sbr.rel (%p248) target = $region24
      $region23: #{c4_forward.2} parent=11 // pred_region
        _
      $region24: #{c4_forward.2} parent=11 // pred_fallthru
        _
    $region12: #{c4_forward.2} parent=5 // pred_fallthru
      _
    %p251 = scmp.lt.s32.totalorder %s14, 2
    // Predicated region
    $region25: #{c4_forward.2} parent=5 // pred_check
      %p252 = pneg %p251
    $region26: #{c4_forward.2} parent=5 // pred_check_branch
      %254 = sbr.rel (%p252) target = $region28
    $region27: #{c4_forward.2} parent=5 // pred_region
      // Predicated region
      $region29: #{c4_forward.2} parent=27 // pred_check
        %p255 = pneg %p48
      $region30: #{c4_forward.2} parent=27 // pred_check_branch
        %257 = sbr.rel (%p255) target = $region32
      $region31: #{c4_forward.2} parent=27 // pred_region
        %s258 = smul.u32 2, %s22
        %p259 = scmp.lt.s32.totalorder %s21, 1
        %s260 = scalar_select %p259, %s21, 1
        %p261 = scmp.lt.s32.totalorder %s258, 1
        %s262 = scalar_select %p261, %s258, 1
        %s263 = smul.addr %s260, 4
        %s264 = sadd.s32 %s262, %s263
        %s265 = smul.addr %s264, 4
        %s266 = scalar_lea.vmem %s0, %s265
        %s267 = smul.u32 2, %s22
      $region32: #{c4_forward.2} parent=27 // pred_fallthru
        _
      // Predicated region
      $region33: #{c4_forward.2} parent=27 // pred_check
        %p268 = pneg %p76
      $region34: #{c4_forward.2} parent=27 // pred_check_branch
        %270 = sbr.rel (%p268) target = $region36
      $region35: #{c4_forward.2} parent=27 // pred_region
        %s271 = smul.u32 2, %s22
        %p272 = scmp.lt.s32.totalorder %s21, 1
        %s273 = scalar_select %p272, %s21, 1
        %p274 = scmp.lt.s32.totalorder %s271, 1
        %s275 = scalar_select %p274, %s271, 1
        %s276 = smul.addr %s273, 4
        %s277 = sadd.s32 %s275, %s276
        %s278 = smul.addr %s277, 4
        %s279 = scalar_lea.vmem %s1, %s278
        %s280 = smul.u32 2, %s22
      $region36: #{c4_forward.2} parent=27 // pred_fallthru
        _
    $region28: #{c4_forward.2} parent=5 // pred_fallthru
      _
    %p281 = scmp.le.s32.totalorder 1, %s14
    %p282 = scmp.lt.s32.totalorder %s14, 3
    %p283 = pnand %p281, %p282
    %p284 = pneg %p283
    // Predicated region
    $region37: #{c4_forward.2} parent=5 // pred_check
      _
    $region38: #{c4_forward.2} parent=5 // pred_check_branch
      %286 = sbr.rel (%p283) target = $region40
    $region39: #{c4_forward.2} parent=5 // pred_region
      %s287 = ssub.s32 %s14, 1
      %s288 = smul.u32 2, %s24
      %p289 = scmp.lt.s32.totalorder %s23, 1
      %s290 = scalar_select %p289, %s23, 1
      %p291 = scmp.lt.s32.totalorder %s288, 1
      %s292 = scalar_select %p291, %s288, 1
      %s293 = smul.addr %s290, 4
      %s294 = sadd.s32 %s292, %s293
      %s295 = smul.addr %s294, 4
      %s296 = scalar_lea.vmem %s0, %s295
      %p297 = pneg %p54
      %p298 = pneg %p51
      %s299 = smul.u32 2, %s24
      %p300 = scmp.lt.s32.totalorder %s23, 1
      %s301 = scalar_select %p300, %s23, 1
      %p302 = scmp.lt.s32.totalorder %s299, 1
      %s303 = scalar_select %p302, %s299, 1
      %s304 = smul.addr %s301, 4
      %s305 = sadd.s32 %s303, %s304
      %s306 = smul.addr %s305, 4
      %s307 = scalar_lea.vmem %s1, %s306
      %p308 = pneg %p82
      %p309 = pneg %p79
      %p310 = pneg %p103
      %p311 = pneg %p100
      %p312 = pneg %p124
      %p313 = pneg %p121
      %p314 = pneg %p145
      %p315 = pneg %p142
      %p316 = pneg %p173
      %p317 = pneg %p170
      %s318 = smul.u32 2, %s24
      %p319 = scmp.lt.s32.totalorder %s23, 1
      %s320 = scalar_select %p319, %s23, 1
      %p321 = scmp.lt.s32.totalorder %s318, 1
      %s322 = scalar_select %p321, %s318, 1
      %s323 = smul.addr %s320, 4
      %s324 = sadd.s32 %s322, %s323
      %s325 = smul.addr %s324, 4
      %s326 = scalar_lea.vmem %s5, %s325
      %p327 = pneg %p201
      %p328 = pneg %p198
      %s329 = smul.u32 2, %s24
      %p330 = scmp.lt.s32.totalorder %s23, 1
      %s331 = scalar_select %p330, %s23, 1
      %p332 = scmp.lt.s32.totalorder %s329, 1
      %s333 = scalar_select %p332, %s329, 1
      %s334 = smul.addr %s331, 4
      %s335 = sadd.s32 %s333, %s334
      %s336 = smul.addr %s335, 4
      %s337 = scalar_lea.vmem %s6, %s336
      %p338 = pneg %p227
      %p339 = pneg %p224
      %p340 = scmp.lt.s32.totalorder %s23, 1
      %s341 = scalar_select %p340, %s23, 1
      %s342 = smul.addr %s341, 2
      %s343 = smul.addr %s342, 8
      %s344 = scalar_lea.vmem %s7, %s343
      %s345 = smul.u32 2, %s24
      %p346 = scmp.lt.s32.totalorder %s23, 1
      %s347 = scalar_select %p346, %s23, 1
      %p348 = scmp.lt.s32.totalorder %s345, 1
      %s349 = scalar_select %p348, %s345, 1
      %s350 = smul.addr %s347, 4
      %s351 = sadd.s32 %s349, %s350
      %s352 = smul.addr %s351, 4
      %s353 = scalar_lea.vmem %s0, %s352
      %s354 = smul.u32 2, %s24
      %s355 = smul.u32 2, %s24
      %p356 = scmp.lt.s32.totalorder %s23, 1
      %s357 = scalar_select %p356, %s23, 1
      %p358 = scmp.lt.s32.totalorder %s355, 1
      %s359 = scalar_select %p358, %s355, 1
      %s360 = smul.addr %s357, 4
      %s361 = sadd.s32 %s359, %s360
      %s362 = smul.addr %s361, 4
      %s363 = scalar_lea.vmem %s1, %s362
      %s364 = smul.u32 2, %s24
      %s365 = smul.u32 2, %s24
      %p366 = scmp.lt.s32.totalorder %s23, 1
      %s367 = scalar_select %p366, %s23, 1
      %p368 = scmp.lt.s32.totalorder %s365, 1
      %s369 = scalar_select %p368, %s365, 1
      %s370 = smul.addr %s367, 4
      %s371 = sadd.s32 %s369, %s370
      %s372 = smul.addr %s371, 4
      %s373 = scalar_lea.vmem %s5, %s372
      %s374 = smul.u32 2, %s24
      %s375 = smul.u32 2, %s24
      %p376 = scmp.lt.s32.totalorder %s23, 1
      %s377 = scalar_select %p376, %s23, 1
      %p378 = scmp.lt.s32.totalorder %s375, 1
      %s379 = scalar_select %p378, %s375, 1
      %s380 = smul.addr %s377, 4
      %s381 = sadd.s32 %s379, %s380
      %s382 = smul.addr %s381, 4
      %s383 = scalar_lea.vmem %s6, %s382
      %s384 = smul.u32 2, %s24
      %p385 = scmp.lt.s32.totalorder %s23, 1
      %s386 = scalar_select %p385, %s23, 1
      %s387 = smul.addr %s386, 2
      %s388 = smul.addr %s387, 8
      %s389 = scalar_lea.vmem %s7, %s388
      %v391 = vld [vmem:[%s353] sm:$0xff]
      %v392 = vld [vmem:[%s353 + $0x8] sm:$0xff]
      %v393 = vld [vmem:[%s363] sm:$0xff]
      %v394 = vld [vmem:[%s363 + $0x8] sm:$0xff]
      %v395 = vld [vmem:[%s4] sm:$0xff]
      %v396 = vld [vmem:[%s4 + $0x8] sm:$0xff]
      %v397 = vld [vmem:[%s4 + $0x10] sm:$0xff]
      %v398 = vld [vmem:[%s4 + $0x18] sm:$0xff]
      %v399 = vld [vmem:[%s4 + $0x20] sm:$0xff]
      %v400 = vld [vmem:[%s4 + $0x28] sm:$0xff]
      %v401 = vld [vmem:[%s4 + $0x30] sm:$0xff]
      %v402 = vld [vmem:[%s4 + $0x38] sm:$0xff]
      %v403 = vld [vmem:[%s4 + $0x40] sm:$0xff]
      %v404 = vld [vmem:[%s4 + $0x48] sm:$0xff]
      %v405 = vld [vmem:[%s4 + $0x50] sm:$0xff]
      %v406 = vld [vmem:[%s4 + $0x58] sm:$0xff]
      %v407 = vld [vmem:[%s4 + $0x60] sm:$0xff]
      %v408 = vld [vmem:[%s4 + $0x68] sm:$0xff]
      %v409 = vld [vmem:[%s4 + $0x70] sm:$0xff]
      %v410 = vld [vmem:[%s4 + $0x78] sm:$0xff]
      %v411 = vld [vmem:[%s4 + $0x80] sm:$0xff]
      %v412 = vld [vmem:[%s4 + $0x88] sm:$0xff]
      %v413 = vld [vmem:[%s4 + $0x90] sm:$0xff]
      %v414 = vld [vmem:[%s4 + $0x98] sm:$0xff]
      %v415 = vld [vmem:[%s2] sm:$0xf]
      %v416 = vld [vmem:[%s2 + $0x4] sm:$0xf]
      %v417 = vld [vmem:[%s2 + $0x8] sm:$0xf]
      %v418 = vld [vmem:[%s2 + $0xc] sm:$0xf]
      %v419 = vld [vmem:[%s2 + $0x10] sm:$0xf]
      %v420 = vld [vmem:[%s2 + $0x14] sm:$0xf]
      %s421 = scalar_lea.vmem %s2, 24
      %v422 = vld [vmem:[%s421] sm:$0xf]
      %v423 = vld [vmem:[%s421 + $0x4] sm:$0xf]
      %v424 = vld [vmem:[%s421 + $0x8] sm:$0xf]
      %v425 = vld [vmem:[%s421 + $0xc] sm:$0xf]
      %v426 = vld [vmem:[%s421 + $0x10] sm:$0xf]
      %v427 = vld [vmem:[%s421 + $0x14] sm:$0xf]
      %429 = vset.pattern.permute.xlu0 0
      %430 = vperm.xlu0 %429, %v395
      %v431 = vpop.permute.xlu0 %430
      %434 = vset.pattern.permute.xlu0 0
      %435 = vperm.xlu0 %434, %v396
      %v436 = vpop.permute.xlu0 %435
      %439 = vset.pattern.permute.xlu0 0
      %440 = vperm.xlu0 %439, %v397
      %v441 = vpop.permute.xlu0 %440
      %444 = vset.pattern.permute.xlu0 0
      %445 = vperm.xlu0 %444, %v398
      %v446 = vpop.permute.xlu0 %445
      %v452 = vunpack.c.l.b16 %v415
      %v453 = vunpack.c.l.b16 %v416
      %v454 = vunpack.c.l.b16 %v417
      %v455 = vunpack.c.l.b16 %v418
      %v456 = vpack.c.b16 %v453, %v452
      %v457 = vpack.c.b16 %v455, %v454
      %v460 = vunpack.c.l.b16 %v391
      %v461 = vunpack.c.h.b16 %v391
      %v462 = vunpack.c.l.b16 %v392
      %v463 = vunpack.c.h.b16 %v392
      %v464 = vpack.c.b16 %v462, %v460
      %v465 = vpack.c.b16 %v463, %v461
      %vm468 = vcmask 130048
      %v470 = vsel %vm468, %v456, 0
      %v473 = vsel %vm468, %v457, 0
      %475 = vmatprep.subr.bf16.mxu0 %v465
      %476 = vmatpush1.bf16.msra.mxu0 %v464
      %477 = vmatprep.subr.bf16.mxu0 0
      %478 = vmatpush1.bf16.msra.mxu0 0
      %479 = vmatprep.subr.bf16.mxu0 0
      %480 = vmatpush1.bf16.msra.mxu0 0
      %481 = vmatprep.subr.bf16.mxu0 0
      %482 = vmatpush1.bf16.msra.mxu0 0
      %483 = vmatprep.subr.bf16.mxu0 0
      %484 = vmatpush1.bf16.msra.mxu0 0
      %485 = vmatprep.subr.bf16.mxu0 0
      %486 = vmatpush1.bf16.msra.mxu0 0
      %487 = vmatprep.subr.bf16.mxu0 0
      %488 = vmatpush1.bf16.msra.mxu0 0
      %489 = vmatprep.subr.bf16.mxu0 0
      %490 = vmatpush1.bf16.msra.mxu0 0
      %491 = vmatprep.subr.bf16.mxu0 0
      %492 = vmatpush1.bf16.msra.mxu0 0
      %493 = vmatprep.subr.bf16.mxu0 0
      %494 = vmatpush1.bf16.msra.mxu0 0
      %495 = vmatprep.subr.bf16.mxu0 0
      %496 = vmatpush1.bf16.msra.mxu0 0
      %497 = vmatprep.subr.bf16.mxu0 0
      %498 = vmatpush1.bf16.msra.mxu0 0
      %499 = vmatprep.subr.bf16.mxu0 0
      %500 = vmatpush1.bf16.msra.mxu0 0
      %501 = vmatprep.subr.bf16.mxu0 0
      %502 = vmatpush1.bf16.msra.mxu0 0
      %503 = vmatprep.subr.bf16.mxu0 0
      %504 = vmatpush1.bf16.msra.mxu0 0
      %505 = vmatprep.subr.bf16.mxu0 0
      %506 = vmatpush1.bf16.msra.mxu0 0
      %507 = vmatprep.mubr.bf16.mxu0 0
      %508 = vmatmul.mubr.bf16.gmra.mrb[0].mxu0 %v470
      %v509 = vpop.f32.mrb[0].mxu0
      %v510 = vadd.f32 %v431, %v509
      %v511 = vpop.f32.mrb[0].mxu0
      %v512 = vadd.f32 %v431, %v511
      %v513 = vpop.f32.mrb[0].mxu0
      %v514 = vadd.f32 %v436, %v513
      %v515 = vpop.f32.mrb[0].mxu0
      %v516 = vadd.f32 %v436, %v515
      %517 = vmatprep.mubr.bf16.mxu0 0
      %518 = vmatmul.mubr.bf16.gmra.mrb[0].mxu0 %v473
      %v519 = vpop.f32.mrb[0].mxu0
      %v520 = vadd.f32 %v441, %v519
      %v521 = vpop.f32.mrb[0].mxu0
      %v522 = vadd.f32 %v441, %v521
      %v523 = vpop.f32.mrb[0].mxu0
      %v524 = vadd.f32 %v446, %v523
      %v525 = vpop.f32.mrb[0].mxu0
      %v526 = vadd.f32 %v446, %v525
      %527 = vdwg.mxu0
      %529 = vset.pattern.permute.xlu0 0
      %530 = vperm.xlu0 %529, %v399
      %v531 = vpop.permute.xlu0 %530
      %534 = vset.pattern.permute.xlu0 0
      %535 = vperm.xlu0 %534, %v400
      %v536 = vpop.permute.xlu0 %535
      %539 = vset.pattern.permute.xlu0 0
      %540 = vperm.xlu0 %539, %v401
      %v541 = vpop.permute.xlu0 %540
      %544 = vset.pattern.permute.xlu0 0
      %545 = vperm.xlu0 %544, %v402
      %v546 = vpop.permute.xlu0 %545
      %v552 = vunpack.c.l.b16 %v422
      %v553 = vunpack.c.l.b16 %v423
      %v554 = vunpack.c.l.b16 %v424
      %v555 = vunpack.c.l.b16 %v425
      %v556 = vpack.c.b16 %v553, %v552
      %v557 = vpack.c.b16 %v555, %v554
      %v560 = vunpack.c.l.b16 %v393
      %v561 = vunpack.c.h.b16 %v393
      %v562 = vunpack.c.l.b16 %v394
      %v563 = vunpack.c.h.b16 %v394
      %v564 = vpack.c.b16 %v562, %v560
      %v565 = vpack.c.b16 %v563, %v561
      %v569 = vsel %vm468, %v556, 0
      %v572 = vsel %vm468, %v557, 0
      %574 = vmatprep.subr.bf16.mxu0 %v565
      %575 = vmatpush1.bf16.msra.mxu0 %v564
      %576 = vmatprep.subr.bf16.mxu0 0
      %577 = vmatpush1.bf16.msra.mxu0 0
      %578 = vmatprep.subr.bf16.mxu0 0
      %579 = vmatpush1.bf16.msra.mxu0 0
      %580 = vmatprep.subr.bf16.mxu0 0
      %581 = vmatpush1.bf16.msra.mxu0 0
      %582 = vmatprep.subr.bf16.mxu0 0
      %583 = vmatpush1.bf16.msra.mxu0 0
      %584 = vmatprep.subr.bf16.mxu0 0
      %585 = vmatpush1.bf16.msra.mxu0 0
      %586 = vmatprep.subr.bf16.mxu0 0
      %587 = vmatpush1.bf16.msra.mxu0 0
      %588 = vmatprep.subr.bf16.mxu0 0
      %589 = vmatpush1.bf16.msra.mxu0 0
      %590 = vmatprep.subr.bf16.mxu0 0
      %591 = vmatpush1.bf16.msra.mxu0 0
      %592 = vmatprep.subr.bf16.mxu0 0
      %593 = vmatpush1.bf16.msra.mxu0 0
      %594 = vmatprep.subr.bf16.mxu0 0
      %595 = vmatpush1.bf16.msra.mxu0 0
      %596 = vmatprep.subr.bf16.mxu0 0
      %597 = vmatpush1.bf16.msra.mxu0 0
      %598 = vmatprep.subr.bf16.mxu0 0
      %599 = vmatpush1.bf16.msra.mxu0 0
      %600 = vmatprep.subr.bf16.mxu0 0
      %601 = vmatpush1.bf16.msra.mxu0 0
      %602 = vmatprep.subr.bf16.mxu0 0
      %603 = vmatpush1.bf16.msra.mxu0 0
      %604 = vmatprep.subr.bf16.mxu0 0
      %605 = vmatpush1.bf16.msra.mxu0 0
      %606 = vmatprep.mubr.bf16.mxu0 0
      %607 = vmatmul.mubr.bf16.gmra.mrb[0].mxu0 %v569
      %v608 = vpop.f32.mrb[0].mxu0
      %v609 = vadd.f32 %v531, %v608
      %v610 = vpop.f32.mrb[0].mxu0
      %v611 = vadd.f32 %v531, %v610
      %v612 = vpop.f32.mrb[0].mxu0
      %v613 = vadd.f32 %v536, %v612
      %v614 = vpop.f32.mrb[0].mxu0
      %v615 = vadd.f32 %v536, %v614
      %616 = vmatprep.mubr.bf16.mxu0 0
      %617 = vmatmul.mubr.bf16.gmra.mrb[0].mxu0 %v572
      %v618 = vpop.f32.mrb[0].mxu0
      %v619 = vadd.f32 %v541, %v618
      %v620 = vpop.f32.mrb[0].mxu0
      %v621 = vadd.f32 %v541, %v620
      %v622 = vpop.f32.mrb[0].mxu0
      %v623 = vadd.f32 %v546, %v622
      %v624 = vpop.f32.mrb[0].mxu0
      %v625 = vadd.f32 %v546, %v624
      %626 = vdwg.mxu0
      %v627 = vmax.f32 %v510, 0.0
      %v628 = vmax.f32 %v512, 0.0
      %v629 = vmax.f32 %v514, 0.0
      %v630 = vmax.f32 %v516, 0.0
      %v631 = vpack.c.bf16 %v629, %v627
      %v632 = vpack.c.bf16 %v630, %v628
      %633 = vst [vmem:[#allocation2] sm:$0xff] %v631
      %634 = vst [vmem:[#allocation2 + $0x8] sm:$0xff] %v632
      %v635 = vmax.f32 %v609, 0.0
      %v636 = vmax.f32 %v611, 0.0
      %v637 = vmax.f32 %v613, 0.0
      %v638 = vmax.f32 %v615, 0.0
      %v639 = vpack.c.bf16 %v637, %v635
      %v640 = vpack.c.bf16 %v638, %v636
      %641 = vst [vmem:[#allocation2 + $0x10] sm:$0xff] %v639
      %642 = vst [vmem:[#allocation2 + $0x18] sm:$0xff] %v640
      %v643 = vld [vmem:[%s3] sm:$0xf]
      %v644 = vld [vmem:[%s3 + $0x4] sm:$0xf]
      %v645 = vld [vmem:[%s3 + $0x8] sm:$0xf]
      %v646 = vld [vmem:[%s3 + $0xc] sm:$0xf]
      %v647 = vld [vmem:[%s3 + $0x10] sm:$0xf]
      %v648 = vld [vmem:[%s3 + $0x14] sm:$0xf]
      %v649 = vld [vmem:[%s3 + $0x18] sm:$0xf]
      %v650 = vld [vmem:[%s3 + $0x1c] sm:$0xf]
      %v651 = vld [vmem:[#allocation2] sm:$0xff]
      %v652 = vld [vmem:[#allocation2 + $0x8] sm:$0xff]
      %v653 = vld [vmem:[#allocation2 + $0x10] sm:$0xff]
      %v654 = vld [vmem:[#allocation2 + $0x18] sm:$0xff]
      %656 = vset.pattern.permute.xlu0 0
      %657 = vperm.xlu0 %656, %v403
      %v658 = vpop.permute.xlu0 %657
      %661 = vset.pattern.permute.xlu0 0
      %662 = vperm.xlu0 %661, %v404
      %v663 = vpop.permute.xlu0 %662
      %666 = vset.pattern.permute.xlu0 0
      %667 = vperm.xlu0 %666, %v405
      %v668 = vpop.permute.xlu0 %667
      %671 = vset.pattern.permute.xlu0 0
      %672 = vperm.xlu0 %671, %v406
      %v673 = vpop.permute.xlu0 %672
      %676 = vset.pattern.permute.xlu0 0
      %677 = vperm.xlu0 %676, %v407
      %v678 = vpop.permute.xlu0 %677
      %681 = vset.pattern.permute.xlu0 0
      %682 = vperm.xlu0 %681, %v408
      %v683 = vpop.permute.xlu0 %682
      %686 = vset.pattern.permute.xlu0 0
      %687 = vperm.xlu0 %686, %v409
      %v688 = vpop.permute.xlu0 %687
      %691 = vset.pattern.permute.xlu0 0
      %692 = vperm.xlu0 %691, %v410
      %v693 = vpop.permute.xlu0 %692
      %v703 = vunpack.c.l.b16 %v643
      %v704 = vunpack.c.l.b16 %v644
      %v705 = vunpack.c.l.b16 %v645
      %v706 = vunpack.c.l.b16 %v646
      %v707 = vunpack.c.l.b16 %v647
      %v708 = vunpack.c.l.b16 %v648
      %v709 = vunpack.c.l.b16 %v649
      %v710 = vunpack.c.l.b16 %v650
      %v711 = vpack.c.b16 %v704, %v703
      %v712 = vpack.c.b16 %v706, %v705
      %v713 = vpack.c.b16 %v708, %v707
      %v714 = vpack.c.b16 %v710, %v709
      %vm715 = vcmask 261120
      %v717 = vsel %vm715, %v711, 0
      %v720 = vsel %vm715, %v712, 0
      %v723 = vsel %vm715, %v713, 0
      %v726 = vsel %vm715, %v714, 0
      %728 = vmatprep.subr.bf16.mxu0 %v652
      %729 = vmatpush1.bf16.msra.mxu0 %v651
      %730 = vmatprep.subr.bf16.mxu0 %v654
      %731 = vmatpush1.bf16.msra.mxu0 %v653
      %732 = vmatprep.subr.bf16.mxu0 0
      %733 = vmatpush1.bf16.msra.mxu0 0
      %734 = vmatprep.subr.bf16.mxu0 0
      %735 = vmatpush1.bf16.msra.mxu0 0
      %736 = vmatprep.subr.bf16.mxu0 0
      %737 = vmatpush1.bf16.msra.mxu0 0
      %738 = vmatprep.subr.bf16.mxu0 0
      %739 = vmatpush1.bf16.msra.mxu0 0
      %740 = vmatprep.subr.bf16.mxu0 0
      %741 = vmatpush1.bf16.msra.mxu0 0
      %742 = vmatprep.subr.bf16.mxu0 0
      %743 = vmatpush1.bf16.msra.mxu0 0
      %744 = vmatprep.subr.bf16.mxu0 0
      %745 = vmatpush1.bf16.msra.mxu0 0
      %746 = vmatprep.subr.bf16.mxu0 0
      %747 = vmatpush1.bf16.msra.mxu0 0
      %748 = vmatprep.subr.bf16.mxu0 0
      %749 = vmatpush1.bf16.msra.mxu0 0
      %750 = vmatprep.subr.bf16.mxu0 0
      %751 = vmatpush1.bf16.msra.mxu0 0
      %752 = vmatprep.subr.bf16.mxu0 0
      %753 = vmatpush1.bf16.msra.mxu0 0
      %754 = vmatprep.subr.bf16.mxu0 0
      %755 = vmatpush1.bf16.msra.mxu0 0
      %756 = vmatprep.subr.bf16.mxu0 0
      %757 = vmatpush1.bf16.msra.mxu0 0
      %758 = vmatprep.subr.bf16.mxu0 0
      %759 = vmatpush1.bf16.msra.mxu0 0
      %760 = vmatprep.mubr.bf16.mxu0 0
      %761 = vmatmul.mubr.bf16.gmra.mrb[0].mxu0 %v717
      %v762 = vpop.f32.mrb[0].mxu0
      %v763 = vadd.f32 %v658, %v762
      %v764 = vpop.f32.mrb[0].mxu0
      %v765 = vadd.f32 %v658, %v764
      %v766 = vpop.f32.mrb[0].mxu0
      %v767 = vadd.f32 %v663, %v766
      %v768 = vpop.f32.mrb[0].mxu0
      %v769 = vadd.f32 %v663, %v768
      %770 = vmatprep.mubr.bf16.mxu0 0
      %771 = vmatmul.mubr.bf16.gmra.mrb[0].mxu0 %v720
      %v772 = vpop.f32.mrb[0].mxu0
      %v773 = vadd.f32 %v668, %v772
      %v774 = vpop.f32.mrb[0].mxu0
      %v775 = vadd.f32 %v668, %v774
      %v776 = vpop.f32.mrb[0].mxu0
      %v777 = vadd.f32 %v673, %v776
      %v778 = vpop.f32.mrb[0].mxu0
      %v779 = vadd.f32 %v673, %v778
      %780 = vmatprep.mubr.bf16.mxu0 0
      %781 = vmatmul.mubr.bf16.gmra.mrb[0].mxu0 %v723
      %v782 = vpop.f32.mrb[0].mxu0
      %v783 = vadd.f32 %v678, %v782
      %v784 = vpop.f32.mrb[0].mxu0
      %v785 = vadd.f32 %v678, %v784
      %v786 = vpop.f32.mrb[0].mxu0
      %v787 = vadd.f32 %v683, %v786
      %v788 = vpop.f32.mrb[0].mxu0
      %v789 = vadd.f32 %v683, %v788
      %790 = vmatprep.mubr.bf16.mxu0 0
      %791 = vmatmul.mubr.bf16.gmra.mrb[0].mxu0 %v726
      %v792 = vpop.f32.mrb[0].mxu0
      %v793 = vadd.f32 %v688, %v792
      %v794 = vpop.f32.mrb[0].mxu0
      %v795 = vadd.f32 %v688, %v794
      %v796 = vpop.f32.mrb[0].mxu0
      %v797 = vadd.f32 %v693, %v796
      %v798 = vpop.f32.mrb[0].mxu0
      %v799 = vadd.f32 %v693, %v798
      %800 = vdwg.mxu0
      %v801 = vadd.f32 %v763, 1.0
      %v802 = vadd.f32 %v765, 1.0
      %v803 = vadd.f32 %v767, 1.0
      %v804 = vadd.f32 %v769, 1.0
      %v805 = vmul.f32 %v801, %v619
      %v806 = vmul.f32 %v802, %v621
      %v807 = vmul.f32 %v803, %v623
      %v808 = vmul.f32 %v804, %v625
      %v809 = vadd.f32 %v805, %v773
      %v810 = vadd.f32 %v806, %v775
      %v811 = vadd.f32 %v807, %v777
      %v812 = vadd.f32 %v808, %v779
      %v813 = vmax.f32 %v809, 0.0
      %v814 = vmax.f32 %v810, 0.0
      %v815 = vmax.f32 %v811, 0.0
      %v816 = vmax.f32 %v812, 0.0
      %v817 = vpack.c.bf16 %v815, %v813
      %v818 = vpack.c.bf16 %v816, %v814
      %v819 = vadd.f32 %v783, 1.0
      %v820 = vadd.f32 %v785, 1.0
      %v821 = vadd.f32 %v787, 1.0
      %v822 = vadd.f32 %v789, 1.0
      %v823 = vmul.f32 %v819, %v520
      %v824 = vmul.f32 %v820, %v522
      %v825 = vmul.f32 %v821, %v524
      %v826 = vmul.f32 %v822, %v526
      %v827 = vadd.f32 %v823, %v793
      %v828 = vadd.f32 %v824, %v795
      %v829 = vadd.f32 %v825, %v797
      %v830 = vadd.f32 %v826, %v799
      %v831 = vmax.f32 %v827, 0.0
      %v832 = vmax.f32 %v828, 0.0
      %v833 = vmax.f32 %v829, 0.0
      %v834 = vmax.f32 %v830, 0.0
      %v835 = vpack.c.bf16 %v833, %v831
      %v836 = vpack.c.bf16 %v834, %v832
      %838 = vset.pattern.permute.xlu0 0
      %839 = vperm.xlu0 %838, %v411
      %v840 = vpop.permute.xlu0 %839
      %843 = vset.pattern.permute.xlu0 0
      %844 = vperm.xlu0 %843, %v412
      %v845 = vpop.permute.xlu0 %844
      %v849 = vunpack.c.l.b16 %v419
      %v850 = vunpack.c.l.b16 %v420
      %v851 = vpack.c.b16 %v850, %v849
      %v853 = vsel %vm468, %v851, 0
      %855 = vmatprep.subr.bf16.mxu0 %v818
      %856 = vmatpush1.bf16.msra.mxu0 %v817
      %857 = vmatprep.subr.bf16.mxu0 0
      %858 = vmatpush1.bf16.msra.mxu0 0
      %859 = vmatprep.subr.bf16.mxu0 0
      %860 = vmatpush1.bf16.msra.mxu0 0
      %861 = vmatprep.subr.bf16.mxu0 0
      %862 = vmatpush1.bf16.msra.mxu0 0
      %863 = vmatprep.subr.bf16.mxu0 0
      %864 = vmatpush1.bf16.msra.mxu0 0
      %865 = vmatprep.subr.bf16.mxu0 0
      %866 = vmatpush1.bf16.msra.mxu0 0
      %867 = vmatprep.subr.bf16.mxu0 0
      %868 = vmatpush1.bf16.msra.mxu0 0
      %869 = vmatprep.subr.bf16.mxu0 0
      %870 = vmatpush1.bf16.msra.mxu0 0
      %871 = vmatprep.subr.bf16.mxu0 0
      %872 = vmatpush1.bf16.msra.mxu0 0
      %873 = vmatprep.subr.bf16.mxu0 0
      %874 = vmatpush1.bf16.msra.mxu0 0
      %875 = vmatprep.subr.bf16.mxu0 0
      %876 = vmatpush1.bf16.msra.mxu0 0
      %877 = vmatprep.subr.bf16.mxu0 0
      %878 = vmatpush1.bf16.msra.mxu0 0
      %879 = vmatprep.subr.bf16.mxu0 0
      %880 = vmatpush1.bf16.msra.mxu0 0
      %881 = vmatprep.subr.bf16.mxu0 0
      %882 = vmatpush1.bf16.msra.mxu0 0
      %883 = vmatprep.subr.bf16.mxu0 0
      %884 = vmatpush1.bf16.msra.mxu0 0
      %885 = vmatprep.subr.bf16.mxu0 0
      %886 = vmatpush1.bf16.msra.mxu0 0
      %887 = vmatprep.mubr.bf16.mxu0 0
      %888 = vmatmul.mubr.bf16.gmra.mrb[0].mxu0 %v853
      %v889 = vpop.f32.mrb[0].mxu0
      %v890 = vadd.f32 %v840, %v889
      %v891 = vpop.f32.mrb[0].mxu0
      %v892 = vadd.f32 %v840, %v891
      %v893 = vpop.f32.mrb[0].mxu0
      %v894 = vadd.f32 %v845, %v893
      %v895 = vpop.f32.mrb[0].mxu0
      %v896 = vadd.f32 %v845, %v895
      %897 = vdwg.mxu0
      %899 = vset.pattern.permute.xlu0 0
      %900 = vperm.xlu0 %899, %v413
      %v901 = vpop.permute.xlu0 %900
      %904 = vset.pattern.permute.xlu0 0
      %905 = vperm.xlu0 %904, %v414
      %v906 = vpop.permute.xlu0 %905
      %v910 = vunpack.c.l.b16 %v426
      %v911 = vunpack.c.l.b16 %v427
      %v912 = vpack.c.b16 %v911, %v910
      %v914 = vsel %vm468, %v912, 0
      %916 = vmatprep.subr.bf16.mxu0 %v836
      %917 = vmatpush1.bf16.msra.mxu0 %v835
      %918 = vmatprep.subr.bf16.mxu0 0
      %919 = vmatpush1.bf16.msra.mxu0 0
      %920 = vmatprep.subr.bf16.mxu0 0
      %921 = vmatpush1.bf16.msra.mxu0 0
      %922 = vmatprep.subr.bf16.mxu0 0
      %923 = vmatpush1.bf16.msra.mxu0 0
      %924 = vmatprep.subr.bf16.mxu0 0
      %925 = vmatpush1.bf16.msra.mxu0 0
      %926 = vmatprep.subr.bf16.mxu0 0
      %927 = vmatpush1.bf16.msra.mxu0 0
      %928 = vmatprep.subr.bf16.mxu0 0
      %929 = vmatpush1.bf16.msra.mxu0 0
      %930 = vmatprep.subr.bf16.mxu0 0
      %931 = vmatpush1.bf16.msra.mxu0 0
      %932 = vmatprep.subr.bf16.mxu0 0
      %933 = vmatpush1.bf16.msra.mxu0 0
      %934 = vmatprep.subr.bf16.mxu0 0
      %935 = vmatpush1.bf16.msra.mxu0 0
      %936 = vmatprep.subr.bf16.mxu0 0
      %937 = vmatpush1.bf16.msra.mxu0 0
      %938 = vmatprep.subr.bf16.mxu0 0
      %939 = vmatpush1.bf16.msra.mxu0 0
      %940 = vmatprep.subr.bf16.mxu0 0
      %941 = vmatpush1.bf16.msra.mxu0 0
      %942 = vmatprep.subr.bf16.mxu0 0
      %943 = vmatpush1.bf16.msra.mxu0 0
      %944 = vmatprep.subr.bf16.mxu0 0
      %945 = vmatpush1.bf16.msra.mxu0 0
      %946 = vmatprep.subr.bf16.mxu0 0
      %947 = vmatpush1.bf16.msra.mxu0 0
      %948 = vmatprep.mubr.bf16.mxu0 0
      %949 = vmatmul.mubr.bf16.gmra.mrb[0].mxu0 %v914
      %v950 = vpop.f32.mrb[0].mxu0
      %v951 = vadd.f32 %v901, %v950
      %v952 = vpop.f32.mrb[0].mxu0
      %v953 = vadd.f32 %v901, %v952
      %v954 = vpop.f32.mrb[0].mxu0
      %v955 = vadd.f32 %v906, %v954
      %v956 = vpop.f32.mrb[0].mxu0
      %v957 = vadd.f32 %v906, %v956
      %958 = vdwg.mxu0
      %v959 = vpack.c.bf16 %v894, %v890
      %v960 = vpack.c.bf16 %v896, %v892
      %v963 = vunpack.c.l.b16 %v959
      %v964 = vunpack.c.l.b16 %v960
      %v965 = vunpack.c.h.b16 %v959
      %v966 = vunpack.c.h.b16 %v960
      %v967 = vpack.c.b16 %v964, %v963
      %v968 = vpack.c.b16 %v966, %v965
      %971 = vst [vmem:[%s373] sm:$0xff] %v967
      %972 = vst [vmem:[%s373 + $0x8] sm:$0xff] %v968
      %v973 = vpack.c.bf16 %v955, %v951
      %v974 = vpack.c.bf16 %v957, %v953
      %v977 = vunpack.c.l.b16 %v973
      %v978 = vunpack.c.l.b16 %v974
      %v979 = vunpack.c.h.b16 %v973
      %v980 = vunpack.c.h.b16 %v974
      %v981 = vpack.c.b16 %v978, %v977
      %v982 = vpack.c.b16 %v980, %v979
      %985 = vst [vmem:[%s383] sm:$0xff] %v981
      %986 = vst [vmem:[%s383 + $0x8] sm:$0xff] %v982
      %v987 = vadd.f32 %v890, %v951
      %v988 = vadd.f32 %v892, %v953
      %v989 = vadd.f32 %v894, %v955
      %v990 = vadd.f32 %v896, %v957
      %v991 = vadd.f32 %v987, %v988
      %992 = vadd.xlane.f32.xlu0 %v991
      %v993 = vpop.xlane.xlu0 %992
      %v994 = vadd.f32 %v989, %v990
      %995 = vadd.xlane.f32.xlu0 %v994
      %v996 = vpop.xlane.xlu0 %995
      %p997 = scmp.eq.s32.totalorder %s24, 0
      // Predicated region
      $region41: #{c4_forward.2} parent=39 // pred_check
        %p998 = pneg %p997
      $region42: #{c4_forward.2} parent=39 // pred_check_branch
        %1000 = sbr.rel (%p998) target = $region44
      $region43: #{c4_forward.2} parent=39 // pred_region
        %vm1001 = vcmask 7168
        %1002 = vst.msk [vmem:[%s389] sm:$0xff] %vm1001, 0.0
        %1003 = vst.msk [vmem:[%s389 + $0x8] sm:$0xff] %vm1001, 0.0
      $region44: #{c4_forward.2} parent=39 // pred_fallthru
        _
      %v1004 = vld [vmem:[%s389] sm:$0xff]
      %v1005 = vld [vmem:[%s389 + $0x8] sm:$0xff]
      %v1006 = vadd.f32 %v1004, %v993
      %v1007 = vadd.f32 %v1005, %v996
      %vm1008 = vcmask 7168
      %1009 = vst.msk [vmem:[%s389] sm:$0xff] %vm1008, %v1006
      %1010 = vst.msk [vmem:[%s389 + $0x8] sm:$0xff] %vm1008, %v1007
      %s1011 = smul.u32 2, %s24
      %p1012 = scmp.lt.s32.totalorder %s23, 1
      %s1013 = scalar_select %p1012, %s23, 1
      %p1014 = scmp.lt.s32.totalorder %s1011, 1
      %s1015 = scalar_select %p1014, %s1011, 1
      %s1016 = smul.addr %s1013, 4
      %s1017 = sadd.s32 %s1015, %s1016
      %s1018 = smul.addr %s1017, 4
      %s1019 = scalar_lea.vmem %s5, %s1018
      %s1020 = smul.u32 2, %s24
      %p1021 = scmp.lt.s32.totalorder %s23, 1
      %s1022 = scalar_select %p1021, %s23, 1
      %p1023 = scmp.lt.s32.totalorder %s1020, 1
      %s1024 = scalar_select %p1023, %s1020, 1
      %s1025 = smul.addr %s1022, 4
      %s1026 = sadd.s32 %s1024, %s1025
      %s1027 = smul.addr %s1026, 4
      %s1028 = scalar_lea.vmem %s6, %s1027
      %p1029 = scmp.lt.s32.totalorder %s23, 1
      %s1030 = scalar_select %p1029, %s23, 1
      %s1031 = smul.addr %s1030, 2
      %s1032 = smul.addr %s1031, 8
      %s1033 = scalar_lea.vmem %s7, %s1032
      // Predicated region
      $region45: #{c4_forward.2} parent=39 // pred_check
        %p1034 = pneg %p170
      $region46: #{c4_forward.2} parent=39 // pred_check_branch
        %1036 = sbr.rel (%p1034) target = $region48
      $region47: #{c4_forward.2} parent=39 // pred_region
        %s1037 = smul.u32 2, %s24
      $region48: #{c4_forward.2} parent=39 // pred_fallthru
        _
      // Predicated region
      $region49: #{c4_forward.2} parent=39 // pred_check
        %p1038 = pneg %p198
      $region50: #{c4_forward.2} parent=39 // pred_check_branch
        %1040 = sbr.rel (%p1038) target = $region52
      $region51: #{c4_forward.2} parent=39 // pred_region
        %s1041 = smul.u32 2, %s24
      $region52: #{c4_forward.2} parent=39 // pred_fallthru
        _
      // Predicated region
      $region53: #{c4_forward.2} parent=39 // pred_check
        %p1042 = pneg %p224
      $region54: #{c4_forward.2} parent=39 // pred_check_branch
        %1044 = sbr.rel (%p1042) target = $region56
      $region55: #{c4_forward.2} parent=39 // pred_region
        _
      $region56: #{c4_forward.2} parent=39 // pred_fallthru
        _
    $region40: #{c4_forward.2} parent=5 // pred_fallthru
      _
    %p1045 = scmp.le.s32.totalorder 2, %s14
    // Predicated region
    $region57: #{c4_forward.2} parent=5 // pred_check
      %p1046 = pneg %p1045
    $region58: #{c4_forward.2} parent=5 // pred_check_branch
      %1048 = sbr.rel (%p1046) target = $region60
    $region59: #{c4_forward.2} parent=5 // pred_region
      %s1049 = ssub.s32 %s14, 2
      // Predicated region
      $region61: #{c4_forward.2} parent=59 // pred_check
        %p1050 = pneg %p176
      $region62: #{c4_forward.2} parent=59 // pred_check_branch
        %1052 = sbr.rel (%p1050) target = $region64
      $region63: #{c4_forward.2} parent=59 // pred_region
        %s1053 = smul.u32 2, %s26
        %p1054 = scmp.lt.s32.totalorder %s25, 1
        %s1055 = scalar_select %p1054, %s25, 1
        %p1056 = scmp.lt.s32.totalorder %s1053, 1
        %s1057 = scalar_select %p1056, %s1053, 1
        %s1058 = smul.addr %s1055, 4
        %s1059 = sadd.s32 %s1057, %s1058
        %s1060 = smul.addr %s1059, 4
        %s1061 = scalar_lea.vmem %s5, %s1060
      $region64: #{c4_forward.2} parent=59 // pred_fallthru
        _
      // Predicated region
      $region65: #{c4_forward.2} parent=59 // pred_check
        %p1062 = pneg %p204
      $region66: #{c4_forward.2} parent=59 // pred_check_branch
        %1064 = sbr.rel (%p1062) target = $region68
      $region67: #{c4_forward.2} parent=59 // pred_region
        %s1065 = smul.u32 2, %s26
        %p1066 = scmp.lt.s32.totalorder %s25, 1
        %s1067 = scalar_select %p1066, %s25, 1
        %p1068 = scmp.lt.s32.totalorder %s1065, 1
        %s1069 = scalar_select %p1068, %s1065, 1
        %s1070 = smul.addr %s1067, 4
        %s1071 = sadd.s32 %s1069, %s1070
        %s1072 = smul.addr %s1071, 4
        %s1073 = scalar_lea.vmem %s6, %s1072
      $region68: #{c4_forward.2} parent=59 // pred_fallthru
        _
      // Predicated region
      $region69: #{c4_forward.2} parent=59 // pred_check
        %p1074 = pneg %p230
      $region70: #{c4_forward.2} parent=59 // pred_check_branch
        %1076 = sbr.rel (%p1074) target = $region72
      $region71: #{c4_forward.2} parent=59 // pred_region
        %p1077 = scmp.lt.s32.totalorder %s25, 1
        %s1078 = scalar_select %p1077, %s25, 1
        %s1079 = smul.addr %s1078, 2
        %s1080 = smul.addr %s1079, 8
        %s1081 = scalar_lea.vmem %s7, %s1080
      $region72: #{c4_forward.2} parent=59 // pred_fallthru
        _
    $region60: #{c4_forward.2} parent=5 // pred_fallthru
      _
  $region6: #{c4_forward.2} parent=0 // loop_footer
    %s18 = sadd.s32 1, %s14
  $region7: #{c4_forward.2} parent=0 // loop_footer_branch
    %13 = sbr.rel target = $region3
  $region8: #{c4_forward.2} parent=0 // loop_exit
    _

</llo_original>
